<compile_context>
chip_gen: v5e
topology: v5e:2x2
jax: 0.10.0
libtpu: 0.0.40
codegen_flags: <defaults>
</compile_context>

<pallas_src>
import math
import functools

import jax
import jax.numpy as jnp
from jax.experimental import pallas as pl
from jax.experimental.pallas import tpu as pltpu


def encoder_layer_kernel(x_ref,
                         wq_ref, bq_ref, wk_ref, bk_ref, wv_ref, bv_ref,
                         wc_ref, bc_ref,
                         g1_ref, beta1_ref,
                         w1_ref, b1_ref, w2_ref, b2_ref,
                         g2_ref, beta2_ref,
                         o_ref,
                         attn_sc,
                         *, n_head, eps):
    Bt, L, D = x_ref.shape
    R = Bt * L
    dt = D // n_head
    scale = 1.0 / math.sqrt(dt)

    x3 = x_ref[...]                        # (Bt, L, D) f32
    xf = x3.reshape(R, D)                  # fused rows for all dense ops

    def linear(v_f32, w_ref, b_ref):
        # bf16 MXU operands (weights already bf16), f32 accumulation, f32 bias add.
        return jnp.dot(v_f32.astype(jnp.bfloat16), w_ref[...],
                       preferred_element_type=jnp.float32) + b_ref[...]

    def layernorm(v, g_ref, b_ref):
        mean = jnp.mean(v, axis=-1, keepdims=True)
        centered = v - mean
        # torch.std(-1) default is unbiased (divide by D-1); eps is added to std.
        var = jnp.sum(centered * centered, axis=-1, keepdims=True) * (1.0 / (D - 1))
        inv = pl.reciprocal(jnp.sqrt(var) + eps, approx=True)
        return g_ref[...] * (centered * inv) + b_ref[...]

    # ---- multi-head self-attention ----
    q = linear(xf, wq_ref, bq_ref) * scale          # fold 1/sqrt(dt) into q
    k = linear(xf, wk_ref, bk_ref)
    v = linear(xf, wv_ref, bv_ref)

    q3 = q.reshape(Bt, L, D).astype(jnp.bfloat16)
    k3 = k.reshape(Bt, L, D).astype(jnp.bfloat16)
    v3 = v.reshape(Bt, L, D).astype(jnp.bfloat16)

    # TODO(synk): for very large L (>~1-2K) switch to a flash-style online-softmax
    # loop over key blocks instead of materializing the full (L, L) scores.
    for h in range(n_head):                         # static unroll over heads
        sl = slice(h * dt, (h + 1) * dt)
        qh, kh, vh = q3[:, :, sl], k3[:, :, sl], v3[:, :, sl]
        # Contract K on its last dim -> no explicit transpose; batched over Bt.
        s = jnp.einsum('bqd,bkd->bqk', qh, kh,
                       preferred_element_type=jnp.float32)        # (Bt, L, L)
        s = s - jnp.max(s, axis=-1, keepdims=True)
        p = jnp.exp(s)
        p = p * pl.reciprocal(jnp.sum(p, axis=-1, keepdims=True), approx=True)
        oh = jnp.einsum('bqk,bkd->bqd', p.astype(jnp.bfloat16), vh,
                        preferred_element_type=jnp.float32)       # (Bt, L, dt)
        attn_sc[:, :, sl] = oh                      # write head slab in place

    attn = linear(attn_sc[...].reshape(R, D), wc_ref, bc_ref)     # w_concat

    # residual + norm1
    # TODO(synk): dropout layers are identity here (inference semantics).
    x1 = layernorm(attn + xf, g1_ref, beta1_ref)

    # ---- position-wise feed-forward ----
    h1 = jnp.maximum(linear(x1, w1_ref, b1_ref), 0.0)             # ReLU
    ffn = linear(h1, w2_ref, b2_ref)

    # residual + norm2
    o_ref[...] = layernorm(ffn + x1, g2_ref, beta2_ref).reshape(Bt, L, D)


PARAM_ORDER = ["wq", "bq", "wk", "bk", "wv", "bv", "wc", "bc",
               "g1", "beta1", "w1", "b1", "w2", "b2", "g2", "beta2"]
MATMUL_WEIGHTS = {"wq", "wk", "wv", "wc", "w1", "w2"}


def _pick_batch_tile(B, L, target_rows=512):
    """Largest divisor of B whose row count Bt*L stays within ~target_rows."""
    bt = 1
    for cand in range(1, B + 1):
        if B % cand == 0 and cand * L <= max(L, target_rows):
            bt = cand
    return bt


def encoder_layer(x, params, s_mask=None, *, n_head, eps=1e-12):
    """Pallas EncoderLayer forward. s_mask is ignored (as in the reference)."""
    B, L, D = x.shape
    assert D % n_head == 0
    Bt = _pick_batch_tile(B, L)

    in_specs = [pl.BlockSpec((Bt, L, D), lambda b: (b, 0, 0))]
    args = [x.astype(jnp.float32)]
    for name in PARAM_ORDER:
        p = params[name]                            # all params are 2-D
        if name in MATMUL_WEIGHTS:
            p = p.astype(jnp.bfloat16)              # bf16 MXU operands, half the DMA
        else:
            p = p.astype(jnp.float32)               # biases / LN params stay f32
        # TODO(synk): on v7x at large D/ffn_hidden, use pipeline_mode=pl.Buffered(1)
        # (constant index_map) or K-tile the FFN weights to respect 64 MiB VMEM.
        in_specs.append(pl.BlockSpec(p.shape, lambda b: (0, 0)))
        args.append(p)

    kernel = functools.partial(encoder_layer_kernel, n_head=n_head, eps=eps)
    return pl.pallas_call(
        kernel,
        out_shape=jax.ShapeDtypeStruct((B, L, D), jnp.float32),
        grid_spec=pltpu.PrefetchScalarGridSpec(
            num_scalar_prefetch=0,
            grid=(B // Bt,),
            in_specs=in_specs,
            out_specs=pl.BlockSpec((Bt, L, D), lambda b: (b, 0, 0)),
            scratch_shapes=[pltpu.VMEM((Bt, L, D), jnp.float32)],
        ),
        compiler_params=pltpu.CompilerParams(
            dimension_semantics=("parallel",),
            vmem_limit_bytes=64 * 1024 * 1024,
        ),
    )(*args)


# ------------------------- pure-JAX f32 reference -------------------------
def reference_forward(x, params, n_head, eps=1e-12):
    B, L, D = x.shape
    dt = D // n_head

    def lin(v, w, b):
        return v @ w + b

    def ln(v, g, b):
        mean = jnp.mean(v, axis=-1, keepdims=True)
        std = jnp.sqrt(jnp.sum((v - mean) ** 2, axis=-1, keepdims=True) / (D - 1))
        return g * ((v - mean) / (std + eps)) + b

    q = lin(x, params["wq"], params["bq"])
    k = lin(x, params["wk"], params["bk"])
    v = lin(x, params["wv"], params["bv"])

    def split(t):
        return t.reshape(B, L, n_head, dt).transpose(0, 2, 1, 3)

    qh, kh, vh = split(q), split(k), split(v)
    score = jnp.einsum("bhld,bhmd->bhlm", qh, kh) / math.sqrt(dt)
    score = jax.nn.softmax(score, axis=-1)
    out = jnp.einsum("bhlm,bhmd->bhld", score, vh)
    out = out.transpose(0, 2, 1, 3).reshape(B, L, D)
    out = lin(out, params["wc"], params["bc"])

    x1 = ln(out + x, params["g1"], params["beta1"])
    h1 = jax.nn.relu(lin(x1, params["w1"], params["b1"]))
    ffn = lin(h1, params["w2"], params["b2"])
    return ln(ffn + x1, params["g2"], params["beta2"])


def init_params(key, d_model, ffn_hidden):
    keys = jax.random.split(key, 12)
    s = 0.05
    return {
        "wq": jax.random.normal(keys[0], (d_model, d_model), jnp.float32) * s,
        "bq": jax.random.normal(keys[1], (1, d_model), jnp.float32) * s,
        "wk": jax.random.normal(keys[2], (d_model, d_model), jnp.float32) * s,
        "bk": jax.random.normal(keys[3], (1, d_model), jnp.float32) * s,
        "wv": jax.random.normal(keys[4], (d_model, d_model), jnp.float32) * s,
        "bv": jax.random.normal(keys[5], (1, d_model), jnp.float32) * s,
        "wc": jax.random.normal(keys[6], (d_model, d_model), jnp.float32) * s,
        "bc": jax.random.normal(keys[7], (1, d_model), jnp.float32) * s,
        "g1": jnp.ones((1, d_model), jnp.float32),
        "beta1": jnp.zeros((1, d_model), jnp.float32),
        "w1": jax.random.normal(keys[8], (d_model, ffn_hidden), jnp.float32) * s,
        "b1": jax.random.normal(keys[9], (1, ffn_hidden), jnp.float32) * s,
        "w2": jax.random.normal(keys[10], (ffn_hidden, d_model), jnp.float32) * s,
        "b2": jax.random.normal(keys[11], (1, d_model), jnp.float32) * s,
        "g2": jnp.ones((1, d_model), jnp.float32),
        "beta2": jnp.zeros((1, d_model), jnp.float32),
    }


if __name__ == "__main__":
    B, L, D = 2, 8, 32
    n_head = 4
    ffn_hidden = 64

    key = jax.random.PRNGKey(0)
    kx, kp = jax.random.split(key)
    x = jax.random.normal(kx, (B, L, D), jnp.float32)
    s_mask = jnp.ones((B, 1, L, L), jnp.float32)   # unused, matches reference API
    params = init_params(kp, D, ffn_hidden)

    out = encoder_layer(x, params, s_mask, n_head=n_head)
    out = jax.block_until_ready(out)

    ref = reference_forward(x, params, n_head)
    assert out.shape == (B, L, D)
    # Kernel uses bf16 MXU operands + approx reciprocal; compare vs f32 reference
    # with a correspondingly relaxed (but still structure-catching) tolerance.
    assert jnp.allclose(out, ref, atol=3e-2, rtol=3e-2), "mismatch vs JAX reference"
    print("KERNEL_OK")
</pallas_src>

<mosaic_0001>
module attributes {stable_mosaic.version = 11 : i64} {
  func.func @encoder_layer_kernel(%arg0: i32, %arg1: memref<2x8x32xf32, #tpu.memory_space<vmem>>, %arg2: memref<32x32xbf16, #tpu.memory_space<vmem>>, %arg3: memref<1x32xf32, #tpu.memory_space<vmem>>, %arg4: memref<32x32xbf16, #tpu.memory_space<vmem>>, %arg5: memref<1x32xf32, #tpu.memory_space<vmem>>, %arg6: memref<32x32xbf16, #tpu.memory_space<vmem>>, %arg7: memref<1x32xf32, #tpu.memory_space<vmem>>, %arg8: memref<32x32xbf16, #tpu.memory_space<vmem>>, %arg9: memref<1x32xf32, #tpu.memory_space<vmem>>, %arg10: memref<1x32xf32, #tpu.memory_space<vmem>>, %arg11: memref<1x32xf32, #tpu.memory_space<vmem>>, %arg12: memref<32x64xbf16, #tpu.memory_space<vmem>>, %arg13: memref<1x64xf32, #tpu.memory_space<vmem>>, %arg14: memref<64x32xbf16, #tpu.memory_space<vmem>>, %arg15: memref<1x32xf32, #tpu.memory_space<vmem>>, %arg16: memref<1x32xf32, #tpu.memory_space<vmem>>, %arg17: memref<1x32xf32, #tpu.memory_space<vmem>>, %arg18: memref<2x8x32xf32, #tpu.memory_space<vmem>>, %arg19: memref<2x8x32xf32, #tpu.memory_space<vmem>>) attributes {dimension_semantics = [#tpu.dimension_semantics<parallel>], iteration_bounds = array<i64: 1>, scalar_prefetch = 0 : i64, scratch_operands = 1 : i64, tpu.core_type = #tpu.core_type<tc>, window_params = [{transform_indices = @transform_0, window_bounds = array<i64: 2, 8, 32>}, {pipeline_mode = #tpu.pipeline_mode<synchronous>, transform_indices = @transform_1, window_bounds = array<i64: 32, 32>}, {pipeline_mode = #tpu.pipeline_mode<synchronous>, transform_indices = @transform_2, window_bounds = array<i64: 1, 32>}, {pipeline_mode = #tpu.pipeline_mode<synchronous>, transform_indices = @transform_3, window_bounds = array<i64: 32, 32>}, {pipeline_mode = #tpu.pipeline_mode<synchronous>, transform_indices = @transform_4, window_bounds = array<i64: 1, 32>}, {pipeline_mode = #tpu.pipeline_mode<synchronous>, transform_indices = @transform_5, window_bounds = array<i64: 32, 32>}, {pipeline_mode = #tpu.pipeline_mode<synchronous>, transform_indices = @transform_6, window_bounds = array<i64: 1, 32>}, {pipeline_mode = #tpu.pipeline_mode<synchronous>, transform_indices = @transform_7, window_bounds = array<i64: 32, 32>}, {pipeline_mode = #tpu.pipeline_mode<synchronous>, transform_indices = @transform_8, window_bounds = array<i64: 1, 32>}, {pipeline_mode = #tpu.pipeline_mode<synchronous>, transform_indices = @transform_9, window_bounds = array<i64: 1, 32>}, {pipeline_mode = #tpu.pipeline_mode<synchronous>, transform_indices = @transform_10, window_bounds = array<i64: 1, 32>}, {pipeline_mode = #tpu.pipeline_mode<synchronous>, transform_indices = @transform_11, window_bounds = array<i64: 32, 64>}, {pipeline_mode = #tpu.pipeline_mode<synchronous>, transform_indices = @transform_12, window_bounds = array<i64: 1, 64>}, {pipeline_mode = #tpu.pipeline_mode<synchronous>, transform_indices = @transform_13, window_bounds = array<i64: 64, 32>}, {pipeline_mode = #tpu.pipeline_mode<synchronous>, transform_indices = @transform_14, window_bounds = array<i64: 1, 32>}, {pipeline_mode = #tpu.pipeline_mode<synchronous>, transform_indices = @transform_15, window_bounds = array<i64: 1, 32>}, {pipeline_mode = #tpu.pipeline_mode<synchronous>, transform_indices = @transform_16, window_bounds = array<i64: 1, 32>}, {transform_indices = @transform_17, window_bounds = array<i64: 2, 8, 32>}]} {
    %c0 = arith.constant 0 : index
    %c0_0 = arith.constant 0 : index
    %c0_1 = arith.constant 0 : index
    %0 = vector.load %arg1[%c0, %c0_0, %c0_1] : memref<2x8x32xf32, #tpu.memory_space<vmem>>, vector<2x8x32xf32>
    %1 = vector.shape_cast %0 : vector<2x8x32xf32> to vector<16x32xf32>
    %2 = arith.truncf %1 : vector<16x32xf32> to vector<16x32xbf16>
    %c0_2 = arith.constant 0 : index
    %c0_3 = arith.constant 0 : index
    %3 = vector.load %arg2[%c0_2, %c0_3] : memref<32x32xbf16, #tpu.memory_space<vmem>>, vector<32x32xbf16>
    %cst = arith.constant dense<0.000000e+00> : vector<16x32xf32>
    %4 = tpu.matmul %2, %3, %cst {dimension_numbers = #tpu.dot_dimension_numbers<[1], [0], [0], [1], [0, 0, 1, 1], [], []>} : vector<16x32xbf16>, vector<32x32xbf16>, vector<16x32xf32> -> vector<16x32xf32>
    %c0_4 = arith.constant 0 : index
    %c0_5 = arith.constant 0 : index
    %5 = vector.load %arg3[%c0_4, %c0_5] : memref<1x32xf32, #tpu.memory_space<vmem>>, vector<1x32xf32>
    %6 = vector.broadcast %5 : vector<1x32xf32> to vector<16x32xf32>
    %7 = arith.addf %4, %6 : vector<16x32xf32>
    %cst_6 = arith.constant 0.353553385 : f32
    %8 = vector.broadcast %cst_6 : f32 to vector<16x32xf32>
    %9 = arith.mulf %7, %8 : vector<16x32xf32>
    %10 = arith.truncf %1 : vector<16x32xf32> to vector<16x32xbf16>
    %c0_7 = arith.constant 0 : index
    %c0_8 = arith.constant 0 : index
    %11 = vector.load %arg4[%c0_7, %c0_8] : memref<32x32xbf16, #tpu.memory_space<vmem>>, vector<32x32xbf16>
    %cst_9 = arith.constant dense<0.000000e+00> : vector<16x32xf32>
    %12 = tpu.matmul %10, %11, %cst_9 {dimension_numbers = #tpu.dot_dimension_numbers<[1], [0], [0], [1], [0, 0, 1, 1], [], []>} : vector<16x32xbf16>, vector<32x32xbf16>, vector<16x32xf32> -> vector<16x32xf32>
    %c0_10 = arith.constant 0 : index
    %c0_11 = arith.constant 0 : index
    %13 = vector.load %arg5[%c0_10, %c0_11] : memref<1x32xf32, #tpu.memory_space<vmem>>, vector<1x32xf32>
    %14 = vector.broadcast %13 : vector<1x32xf32> to vector<16x32xf32>
    %15 = arith.addf %12, %14 : vector<16x32xf32>
    %16 = arith.truncf %1 : vector<16x32xf32> to vector<16x32xbf16>
    %c0_12 = arith.constant 0 : index
    %c0_13 = arith.constant 0 : index
    %17 = vector.load %arg6[%c0_12, %c0_13] : memref<32x32xbf16, #tpu.memory_space<vmem>>, vector<32x32xbf16>
    %cst_14 = arith.constant dense<0.000000e+00> : vector<16x32xf32>
    %18 = tpu.matmul %16, %17, %cst_14 {dimension_numbers = #tpu.dot_dimension_numbers<[1], [0], [0], [1], [0, 0, 1, 1], [], []>} : vector<16x32xbf16>, vector<32x32xbf16>, vector<16x32xf32> -> vector<16x32xf32>
    %c0_15 = arith.constant 0 : index
    %c0_16 = arith.constant 0 : index
    %19 = vector.load %arg7[%c0_15, %c0_16] : memref<1x32xf32, #tpu.memory_space<vmem>>, vector<1x32xf32>
    %20 = vector.broadcast %19 : vector<1x32xf32> to vector<16x32xf32>
    %21 = arith.addf %18, %20 : vector<16x32xf32>
    %22 = vector.shape_cast %9 : vector<16x32xf32> to vector<2x8x32xf32>
    %23 = arith.truncf %22 : vector<2x8x32xf32> to vector<2x8x32xbf16>
    %24 = vector.shape_cast %15 : vector<16x32xf32> to vector<2x8x32xf32>
    %25 = arith.truncf %24 : vector<2x8x32xf32> to vector<2x8x32xbf16>
    %26 = vector.shape_cast %21 : vector<16x32xf32> to vector<2x8x32xf32>
    %27 = arith.truncf %26 : vector<2x8x32xf32> to vector<2x8x32xbf16>
    %28 = vector.extract_strided_slice %23 {offsets = [0, 0, 0], sizes = [2, 8, 8], strides = [1, 1, 1]} : vector<2x8x32xbf16> to vector<2x8x8xbf16>
    %29 = vector.extract_strided_slice %25 {offsets = [0, 0, 0], sizes = [2, 8, 8], strides = [1, 1, 1]} : vector<2x8x32xbf16> to vector<2x8x8xbf16>
    %30 = vector.extract_strided_slice %27 {offsets = [0, 0, 0], sizes = [2, 8, 8], strides = [1, 1, 1]} : vector<2x8x32xbf16> to vector<2x8x8xbf16>
    "tpu.trace_start"() <{level = 10 : i32, message = "bqd,bkd->bqk"}> : () -> ()
    %cst_17 = arith.constant dense<0.000000e+00> : vector<2x8x8xf32>
    %31 = tpu.matmul %28, %29, %cst_17 {dimension_numbers = #tpu.dot_dimension_numbers<[2], [2], [1], [1], [0, 0, 0, 1, 1, 1], [0], [0]>} : vector<2x8x8xbf16>, vector<2x8x8xbf16>, vector<2x8x8xf32> -> vector<2x8x8xf32>
    "tpu.trace_stop"() : () -> ()
    %cst_18 = arith.constant dense<0xFF800000> : vector<2x8xf32>
    %32 = vector.multi_reduction <maximumf>, %31, %cst_18 [2] : vector<2x8x8xf32> to vector<2x8xf32>
    %33 = vector.shape_cast %32 : vector<2x8xf32> to vector<2x8x1xf32>
    %34 = vector.broadcast %33 : vector<2x8x1xf32> to vector<2x8x8xf32>
    %35 = arith.subf %31, %34 : vector<2x8x8xf32>
    %36 = math.exp %35 : vector<2x8x8xf32>
    %cst_19 = arith.constant dense<0.000000e+00> : vector<2x8xf32>
    %37 = vector.multi_reduction <add>, %36, %cst_19 [2] : vector<2x8x8xf32> to vector<2x8xf32>
    %38 = vector.shape_cast %37 : vector<2x8xf32> to vector<2x8x1xf32>
    %39 = tpu.reciprocal %38 {approx = true} : vector<2x8x1xf32> -> vector<2x8x1xf32>
    %40 = vector.broadcast %39 : vector<2x8x1xf32> to vector<2x8x8xf32>
    %41 = arith.mulf %36, %40 : vector<2x8x8xf32>
    %42 = arith.truncf %41 : vector<2x8x8xf32> to vector<2x8x8xbf16>
    "tpu.trace_start"() <{level = 10 : i32, message = "bqk,bkd->bqd"}> : () -> ()
    %cst_20 = arith.constant dense<0.000000e+00> : vector<2x8x8xf32>
    %43 = tpu.matmul %42, %30, %cst_20 {dimension_numbers = #tpu.dot_dimension_numbers<[2], [1], [1], [2], [0, 0, 0, 1, 1, 2], [0], [0]>} : vector<2x8x8xbf16>, vector<2x8x8xbf16>, vector<2x8x8xf32> -> vector<2x8x8xf32>
    "tpu.trace_stop"() : () -> ()
    %c0_21 = arith.constant 0 : index
    %c0_22 = arith.constant 0 : index
    %c0_23 = arith.constant 0 : index
    %44 = vector.load %arg19[%c0_21, %c0_22, %c0_23] : memref<2x8x32xf32, #tpu.memory_space<vmem>>, vector<2x8x8xf32>
    tpu.vector_store %arg19[%c0_21, %c0_22, %c0_23], %43 {strides = array<i32>} : memref<2x8x32xf32, #tpu.memory_space<vmem>>, vector<2x8x8xf32>,
    %45 = vector.extract_strided_slice %23 {offsets = [0, 0, 8], sizes = [2, 8, 8], strides = [1, 1, 1]} : vector<2x8x32xbf16> to vector<2x8x8xbf16>
    %46 = vector.extract_strided_slice %25 {offsets = [0, 0, 8], sizes = [2, 8, 8], strides = [1, 1, 1]} : vector<2x8x32xbf16> to vector<2x8x8xbf16>
    %47 = vector.extract_strided_slice %27 {offsets = [0, 0, 8], sizes = [2, 8, 8], strides = [1, 1, 1]} : vector<2x8x32xbf16> to vector<2x8x8xbf16>
    "tpu.trace_start"() <{level = 10 : i32, message = "bqd,bkd->bqk"}> : () -> ()
    %cst_24 = arith.constant dense<0.000000e+00> : vector<2x8x8xf32>
    %48 = tpu.matmul %45, %46, %cst_24 {dimension_numbers = #tpu.dot_dimension_numbers<[2], [2], [1], [1], [0, 0, 0, 1, 1, 1], [0], [0]>} : vector<2x8x8xbf16>, vector<2x8x8xbf16>, vector<2x8x8xf32> -> vector<2x8x8xf32>
    "tpu.trace_stop"() : () -> ()
    %cst_25 = arith.constant dense<0xFF800000> : vector<2x8xf32>
    %49 = vector.multi_reduction <maximumf>, %48, %cst_25 [2] : vector<2x8x8xf32> to vector<2x8xf32>
    %50 = vector.shape_cast %49 : vector<2x8xf32> to vector<2x8x1xf32>
    %51 = vector.broadcast %50 : vector<2x8x1xf32> to vector<2x8x8xf32>
    %52 = arith.subf %48, %51 : vector<2x8x8xf32>
    %53 = math.exp %52 : vector<2x8x8xf32>
    %cst_26 = arith.constant dense<0.000000e+00> : vector<2x8xf32>
    %54 = vector.multi_reduction <add>, %53, %cst_26 [2] : vector<2x8x8xf32> to vector<2x8xf32>
    %55 = vector.shape_cast %54 : vector<2x8xf32> to vector<2x8x1xf32>
    %56 = tpu.reciprocal %55 {approx = true} : vector<2x8x1xf32> -> vector<2x8x1xf32>
    %57 = vector.broadcast %56 : vector<2x8x1xf32> to vector<2x8x8xf32>
    %58 = arith.mulf %53, %57 : vector<2x8x8xf32>
    %59 = arith.truncf %58 : vector<2x8x8xf32> to vector<2x8x8xbf16>
    "tpu.trace_start"() <{level = 10 : i32, message = "bqk,bkd->bqd"}> : () -> ()
    %cst_27 = arith.constant dense<0.000000e+00> : vector<2x8x8xf32>
    %60 = tpu.matmul %59, %47, %cst_27 {dimension_numbers = #tpu.dot_dimension_numbers<[2], [1], [1], [2], [0, 0, 0, 1, 1, 2], [0], [0]>} : vector<2x8x8xbf16>, vector<2x8x8xbf16>, vector<2x8x8xf32> -> vector<2x8x8xf32>
    "tpu.trace_stop"() : () -> ()
    %c0_28 = arith.constant 0 : index
    %c0_29 = arith.constant 0 : index
    %c8 = arith.constant 8 : index
    %61 = vector.load %arg19[%c0_28, %c0_29, %c8] : memref<2x8x32xf32, #tpu.memory_space<vmem>>, vector<2x8x8xf32>
    tpu.vector_store %arg19[%c0_28, %c0_29, %c8], %60 {strides = array<i32>} : memref<2x8x32xf32, #tpu.memory_space<vmem>>, vector<2x8x8xf32>,
    %62 = vector.extract_strided_slice %23 {offsets = [0, 0, 16], sizes = [2, 8, 8], strides = [1, 1, 1]} : vector<2x8x32xbf16> to vector<2x8x8xbf16>
    %63 = vector.extract_strided_slice %25 {offsets = [0, 0, 16], sizes = [2, 8, 8], strides = [1, 1, 1]} : vector<2x8x32xbf16> to vector<2x8x8xbf16>
    %64 = vector.extract_strided_slice %27 {offsets = [0, 0, 16], sizes = [2, 8, 8], strides = [1, 1, 1]} : vector<2x8x32xbf16> to vector<2x8x8xbf16>
    "tpu.trace_start"() <{level = 10 : i32, message = "bqd,bkd->bqk"}> : () -> ()
    %cst_30 = arith.constant dense<0.000000e+00> : vector<2x8x8xf32>
    %65 = tpu.matmul %62, %63, %cst_30 {dimension_numbers = #tpu.dot_dimension_numbers<[2], [2], [1], [1], [0, 0, 0, 1, 1, 1], [0], [0]>} : vector<2x8x8xbf16>, vector<2x8x8xbf16>, vector<2x8x8xf32> -> vector<2x8x8xf32>
    "tpu.trace_stop"() : () -> ()
    %cst_31 = arith.constant dense<0xFF800000> : vector<2x8xf32>
    %66 = vector.multi_reduction <maximumf>, %65, %cst_31 [2] : vector<2x8x8xf32> to vector<2x8xf32>
    %67 = vector.shape_cast %66 : vector<2x8xf32> to vector<2x8x1xf32>
    %68 = vector.broadcast %67 : vector<2x8x1xf32> to vector<2x8x8xf32>
    %69 = arith.subf %65, %68 : vector<2x8x8xf32>
    %70 = math.exp %69 : vector<2x8x8xf32>
    %cst_32 = arith.constant dense<0.000000e+00> : vector<2x8xf32>
    %71 = vector.multi_reduction <add>, %70, %cst_32 [2] : vector<2x8x8xf32> to vector<2x8xf32>
    %72 = vector.shape_cast %71 : vector<2x8xf32> to vector<2x8x1xf32>
    %73 = tpu.reciprocal %72 {approx = true} : vector<2x8x1xf32> -> vector<2x8x1xf32>
    %74 = vector.broadcast %73 : vector<2x8x1xf32> to vector<2x8x8xf32>
    %75 = arith.mulf %70, %74 : vector<2x8x8xf32>
    %76 = arith.truncf %75 : vector<2x8x8xf32> to vector<2x8x8xbf16>
    "tpu.trace_start"() <{level = 10 : i32, message = "bqk,bkd->bqd"}> : () -> ()
    %cst_33 = arith.constant dense<0.000000e+00> : vector<2x8x8xf32>
    %77 = tpu.matmul %76, %64, %cst_33 {dimension_numbers = #tpu.dot_dimension_numbers<[2], [1], [1], [2], [0, 0, 0, 1, 1, 2], [0], [0]>} : vector<2x8x8xbf16>, vector<2x8x8xbf16>, vector<2x8x8xf32> -> vector<2x8x8xf32>
    "tpu.trace_stop"() : () -> ()
    %c0_34 = arith.constant 0 : index
    %c0_35 = arith.constant 0 : index
    %c16 = arith.constant 16 : index
    %78 = vector.load %arg19[%c0_34, %c0_35, %c16] : memref<2x8x32xf32, #tpu.memory_space<vmem>>, vector<2x8x8xf32>
    tpu.vector_store %arg19[%c0_34, %c0_35, %c16], %77 {strides = array<i32>} : memref<2x8x32xf32, #tpu.memory_space<vmem>>, vector<2x8x8xf32>,
    %79 = vector.extract_strided_slice %23 {offsets = [0, 0, 24], sizes = [2, 8, 8], strides = [1, 1, 1]} : vector<2x8x32xbf16> to vector<2x8x8xbf16>
    %80 = vector.extract_strided_slice %25 {offsets = [0, 0, 24], sizes = [2, 8, 8], strides = [1, 1, 1]} : vector<2x8x32xbf16> to vector<2x8x8xbf16>
    %81 = vector.extract_strided_slice %27 {offsets = [0, 0, 24], sizes = [2, 8, 8], strides = [1, 1, 1]} : vector<2x8x32xbf16> to vector<2x8x8xbf16>
    "tpu.trace_start"() <{level = 10 : i32, message = "bqd,bkd->bqk"}> : () -> ()
    %cst_36 = arith.constant dense<0.000000e+00> : vector<2x8x8xf32>
    %82 = tpu.matmul %79, %80, %cst_36 {dimension_numbers = #tpu.dot_dimension_numbers<[2], [2], [1], [1], [0, 0, 0, 1, 1, 1], [0], [0]>} : vector<2x8x8xbf16>, vector<2x8x8xbf16>, vector<2x8x8xf32> -> vector<2x8x8xf32>
    "tpu.trace_stop"() : () -> ()
    %cst_37 = arith.constant dense<0xFF800000> : vector<2x8xf32>
    %83 = vector.multi_reduction <maximumf>, %82, %cst_37 [2] : vector<2x8x8xf32> to vector<2x8xf32>
    %84 = vector.shape_cast %83 : vector<2x8xf32> to vector<2x8x1xf32>
    %85 = vector.broadcast %84 : vector<2x8x1xf32> to vector<2x8x8xf32>
    %86 = arith.subf %82, %85 : vector<2x8x8xf32>
    %87 = math.exp %86 : vector<2x8x8xf32>
    %cst_38 = arith.constant dense<0.000000e+00> : vector<2x8xf32>
    %88 = vector.multi_reduction <add>, %87, %cst_38 [2] : vector<2x8x8xf32> to vector<2x8xf32>
    %89 = vector.shape_cast %88 : vector<2x8xf32> to vector<2x8x1xf32>
    %90 = tpu.reciprocal %89 {approx = true} : vector<2x8x1xf32> -> vector<2x8x1xf32>
    %91 = vector.broadcast %90 : vector<2x8x1xf32> to vector<2x8x8xf32>
    %92 = arith.mulf %87, %91 : vector<2x8x8xf32>
    %93 = arith.truncf %92 : vector<2x8x8xf32> to vector<2x8x8xbf16>
    "tpu.trace_start"() <{level = 10 : i32, message = "bqk,bkd->bqd"}> : () -> ()
    %cst_39 = arith.constant dense<0.000000e+00> : vector<2x8x8xf32>
    %94 = tpu.matmul %93, %81, %cst_39 {dimension_numbers = #tpu.dot_dimension_numbers<[2], [1], [1], [2], [0, 0, 0, 1, 1, 2], [0], [0]>} : vector<2x8x8xbf16>, vector<2x8x8xbf16>, vector<2x8x8xf32> -> vector<2x8x8xf32>
    "tpu.trace_stop"() : () -> ()
    %c0_40 = arith.constant 0 : index
    %c0_41 = arith.constant 0 : index
    %c24 = arith.constant 24 : index
    %95 = vector.load %arg19[%c0_40, %c0_41, %c24] : memref<2x8x32xf32, #tpu.memory_space<vmem>>, vector<2x8x8xf32>
    tpu.vector_store %arg19[%c0_40, %c0_41, %c24], %94 {strides = array<i32>} : memref<2x8x32xf32, #tpu.memory_space<vmem>>, vector<2x8x8xf32>,
    %c0_42 = arith.constant 0 : index
    %c0_43 = arith.constant 0 : index
    %c0_44 = arith.constant 0 : index
    %96 = vector.load %arg19[%c0_42, %c0_43, %c0_44] : memref<2x8x32xf32, #tpu.memory_space<vmem>>, vector<2x8x32xf32>
    %97 = vector.shape_cast %96 : vector<2x8x32xf32> to vector<16x32xf32>
    %98 = arith.truncf %97 : vector<16x32xf32> to vector<16x32xbf16>
    %c0_45 = arith.constant 0 : index
    %c0_46 = arith.constant 0 : index
    %99 = vector.load %arg8[%c0_45, %c0_46] : memref<32x32xbf16, #tpu.memory_space<vmem>>, vector<32x32xbf16>
    %cst_47 = arith.constant dense<0.000000e+00> : vector<16x32xf32>
    %100 = tpu.matmul %98, %99, %cst_47 {dimension_numbers = #tpu.dot_dimension_numbers<[1], [0], [0], [1], [0, 0, 1, 1], [], []>} : vector<16x32xbf16>, vector<32x32xbf16>, vector<16x32xf32> -> vector<16x32xf32>
    %c0_48 = arith.constant 0 : index
    %c0_49 = arith.constant 0 : index
    %101 = vector.load %arg9[%c0_48, %c0_49] : memref<1x32xf32, #tpu.memory_space<vmem>>, vector<1x32xf32>
    %102 = vector.broadcast %101 : vector<1x32xf32> to vector<16x32xf32>
    %103 = arith.addf %100, %102 : vector<16x32xf32>
    %104 = arith.addf %103, %1 : vector<16x32xf32>
    %cst_50 = arith.constant dense<0.000000e+00> : vector<16xf32>
    %105 = vector.multi_reduction <add>, %104, %cst_50 [1] : vector<16x32xf32> to vector<16xf32>
    %106 = vector.shape_cast %105 : vector<16xf32> to vector<16x1xf32>
    %cst_51 = arith.constant 3.200000e+01 : f32
    %107 = vector.broadcast %cst_51 : f32 to vector<16x1xf32>
    %108 = arith.divf %106, %107 : vector<16x1xf32>
    %109 = vector.broadcast %108 : vector<16x1xf32> to vector<16x32xf32>
    %110 = arith.subf %104, %109 : vector<16x32xf32>
    %111 = arith.mulf %110, %110 : vector<16x32xf32>
    %cst_52 = arith.constant dense<0.000000e+00> : vector<16xf32>
    %112 = vector.multi_reduction <add>, %111, %cst_52 [1] : vector<16x32xf32> to vector<16xf32>
    %113 = vector.shape_cast %112 : vector<16xf32> to vector<16x1xf32>
    %cst_53 = arith.constant 0.0322580636 : f32
    %114 = vector.broadcast %cst_53 : f32 to vector<16x1xf32>
    %115 = arith.mulf %113, %114 : vector<16x1xf32>
    %116 = math.sqrt %115 : vector<16x1xf32>
    %cst_54 = arith.constant 9.99999996E-13 : f32
    %117 = vector.broadcast %cst_54 : f32 to vector<16x1xf32>
    %118 = arith.addf %116, %117 : vector<16x1xf32>
    %119 = tpu.reciprocal %118 {approx = true} : vector<16x1xf32> -> vector<16x1xf32>
    %c0_55 = arith.constant 0 : index
    %c0_56 = arith.constant 0 : index
    %120 = vector.load %arg10[%c0_55, %c0_56] : memref<1x32xf32, #tpu.memory_space<vmem>>, vector<1x32xf32>
    %121 = vector.broadcast %119 : vector<16x1xf32> to vector<16x32xf32>
    %122 = arith.mulf %110, %121 : vector<16x32xf32>
    %123 = vector.broadcast %120 : vector<1x32xf32> to vector<16x32xf32>
    %124 = arith.mulf %123, %122 : vector<16x32xf32>
    %c0_57 = arith.constant 0 : index
    %c0_58 = arith.constant 0 : index
    %125 = vector.load %arg11[%c0_57, %c0_58] : memref<1x32xf32, #tpu.memory_space<vmem>>, vector<1x32xf32>
    %126 = vector.broadcast %125 : vector<1x32xf32> to vector<16x32xf32>
    %127 = arith.addf %124, %126 : vector<16x32xf32>
    %128 = arith.truncf %127 : vector<16x32xf32> to vector<16x32xbf16>
    %c0_59 = arith.constant 0 : index
    %c0_60 = arith.constant 0 : index
    %129 = vector.load %arg12[%c0_59, %c0_60] : memref<32x64xbf16, #tpu.memory_space<vmem>>, vector<32x64xbf16>
    %cst_61 = arith.constant dense<0.000000e+00> : vector<16x64xf32>
    %130 = tpu.matmul %128, %129, %cst_61 {dimension_numbers = #tpu.dot_dimension_numbers<[1], [0], [0], [1], [0, 0, 1, 1], [], []>} : vector<16x32xbf16>, vector<32x64xbf16>, vector<16x64xf32> -> vector<16x64xf32>
    %c0_62 = arith.constant 0 : index
    %c0_63 = arith.constant 0 : index
    %131 = vector.load %arg13[%c0_62, %c0_63] : memref<1x64xf32, #tpu.memory_space<vmem>>, vector<1x64xf32>
    %132 = vector.broadcast %131 : vector<1x64xf32> to vector<16x64xf32>
    %133 = arith.addf %130, %132 : vector<16x64xf32>
    %cst_64 = arith.constant 0.000000e+00 : f32
    %134 = vector.broadcast %cst_64 : f32 to vector<16x64xf32>
    %135 = arith.maximumf %133, %134 : vector<16x64xf32>
    %136 = arith.truncf %135 : vector<16x64xf32> to vector<16x64xbf16>
    %c0_65 = arith.constant 0 : index
    %c0_66 = arith.constant 0 : index
    %137 = vector.load %arg14[%c0_65, %c0_66] : memref<64x32xbf16, #tpu.memory_space<vmem>>, vector<64x32xbf16>
    %cst_67 = arith.constant dense<0.000000e+00> : vector<16x32xf32>
    %138 = tpu.matmul %136, %137, %cst_67 {dimension_numbers = #tpu.dot_dimension_numbers<[1], [0], [0], [1], [0, 0, 1, 1], [], []>} : vector<16x64xbf16>, vector<64x32xbf16>, vector<16x32xf32> -> vector<16x32xf32>
    %c0_68 = arith.constant 0 : index
    %c0_69 = arith.constant 0 : index
    %139 = vector.load %arg15[%c0_68, %c0_69] : memref<1x32xf32, #tpu.memory_space<vmem>>, vector<1x32xf32>
    %140 = vector.broadcast %139 : vector<1x32xf32> to vector<16x32xf32>
    %141 = arith.addf %138, %140 : vector<16x32xf32>
    %142 = arith.addf %141, %127 : vector<16x32xf32>
    %cst_70 = arith.constant dense<0.000000e+00> : vector<16xf32>
    %143 = vector.multi_reduction <add>, %142, %cst_70 [1] : vector<16x32xf32> to vector<16xf32>
    %144 = vector.shape_cast %143 : vector<16xf32> to vector<16x1xf32>
    %cst_71 = arith.constant 3.200000e+01 : f32
    %145 = vector.broadcast %cst_71 : f32 to vector<16x1xf32>
    %146 = arith.divf %144, %145 : vector<16x1xf32>
    %147 = vector.broadcast %146 : vector<16x1xf32> to vector<16x32xf32>
    %148 = arith.subf %142, %147 : vector<16x32xf32>
    %149 = arith.mulf %148, %148 : vector<16x32xf32>
    %cst_72 = arith.constant dense<0.000000e+00> : vector<16xf32>
    %150 = vector.multi_reduction <add>, %149, %cst_72 [1] : vector<16x32xf32> to vector<16xf32>
    %151 = vector.shape_cast %150 : vector<16xf32> to vector<16x1xf32>
    %cst_73 = arith.constant 0.0322580636 : f32
    %152 = vector.broadcast %cst_73 : f32 to vector<16x1xf32>
    %153 = arith.mulf %151, %152 : vector<16x1xf32>
    %154 = math.sqrt %153 : vector<16x1xf32>
    %cst_74 = arith.constant 9.99999996E-13 : f32
    %155 = vector.broadcast %cst_74 : f32 to vector<16x1xf32>
    %156 = arith.addf %154, %155 : vector<16x1xf32>
    %157 = tpu.reciprocal %156 {approx = true} : vector<16x1xf32> -> vector<16x1xf32>
    %c0_75 = arith.constant 0 : index
    %c0_76 = arith.constant 0 : index
    %158 = vector.load %arg16[%c0_75, %c0_76] : memref<1x32xf32, #tpu.memory_space<vmem>>, vector<1x32xf32>
    %159 = vector.broadcast %157 : vector<16x1xf32> to vector<16x32xf32>
    %160 = arith.mulf %148, %159 : vector<16x32xf32>
    %161 = vector.broadcast %158 : vector<1x32xf32> to vector<16x32xf32>
    %162 = arith.mulf %161, %160 : vector<16x32xf32>
    %c0_77 = arith.constant 0 : index
    %c0_78 = arith.constant 0 : index
    %163 = vector.load %arg17[%c0_77, %c0_78] : memref<1x32xf32, #tpu.memory_space<vmem>>, vector<1x32xf32>
    %164 = vector.broadcast %163 : vector<1x32xf32> to vector<16x32xf32>
    %165 = arith.addf %162, %164 : vector<16x32xf32>
    %166 = vector.shape_cast %165 : vector<16x32xf32> to vector<2x8x32xf32>
    %c0_79 = arith.constant 0 : index
    %c0_80 = arith.constant 0 : index
    %c0_81 = arith.constant 0 : index
    %167 = vector.load %arg18[%c0_79, %c0_80, %c0_81] : memref<2x8x32xf32, #tpu.memory_space<vmem>>, vector<2x8x32xf32>
    tpu.vector_store %arg18[%c0_79, %c0_80, %c0_81], %166 {strides = array<i32>} : memref<2x8x32xf32, #tpu.memory_space<vmem>>, vector<2x8x32xf32>,
    return
  }
  func.func @transform_0(%arg0: i32) -> (i32, i32, i32) {
    %c0_i32 = arith.constant 0 : i32
    %c0_i32_0 = arith.constant 0 : i32
    %c0_i32_1 = arith.constant 0 : i32
    return %arg0, %c0_i32, %c0_i32_0 : i32, i32, i32
  }
  func.func @transform_1(%arg0: i32) -> (i32, i32) {
    %c0_i32 = arith.constant 0 : i32
    %c0_i32_0 = arith.constant 0 : i32
    %c0_i32_1 = arith.constant 0 : i32
    return %c0_i32, %c0_i32_0 : i32, i32
  }
  func.func @transform_2(%arg0: i32) -> (i32, i32) {
    %c0_i32 = arith.constant 0 : i32
    %c0_i32_0 = arith.constant 0 : i32
    %c0_i32_1 = arith.constant 0 : i32
    return %c0_i32, %c0_i32_0 : i32, i32
  }
  func.func @transform_3(%arg0: i32) -> (i32, i32) {
    %c0_i32 = arith.constant 0 : i32
    %c0_i32_0 = arith.constant 0 : i32
    %c0_i32_1 = arith.constant 0 : i32
    return %c0_i32, %c0_i32_0 : i32, i32
  }
  func.func @transform_4(%arg0: i32) -> (i32, i32) {
    %c0_i32 = arith.constant 0 : i32
    %c0_i32_0 = arith.constant 0 : i32
    %c0_i32_1 = arith.constant 0 : i32
    return %c0_i32, %c0_i32_0 : i32, i32
  }
  func.func @transform_5(%arg0: i32) -> (i32, i32) {
    %c0_i32 = arith.constant 0 : i32
    %c0_i32_0 = arith.constant 0 : i32
    %c0_i32_1 = arith.constant 0 : i32
    return %c0_i32, %c0_i32_0 : i32, i32
  }
  func.func @transform_6(%arg0: i32) -> (i32, i32) {
    %c0_i32 = arith.constant 0 : i32
    %c0_i32_0 = arith.constant 0 : i32
    %c0_i32_1 = arith.constant 0 : i32
    return %c0_i32, %c0_i32_0 : i32, i32
  }
  func.func @transform_7(%arg0: i32) -> (i32, i32) {
    %c0_i32 = arith.constant 0 : i32
    %c0_i32_0 = arith.constant 0 : i32
    %c0_i32_1 = arith.constant 0 : i32
    return %c0_i32, %c0_i32_0 : i32, i32
  }
  func.func @transform_8(%arg0: i32) -> (i32, i32) {
    %c0_i32 = arith.constant 0 : i32
    %c0_i32_0 = arith.constant 0 : i32
    %c0_i32_1 = arith.constant 0 : i32
    return %c0_i32, %c0_i32_0 : i32, i32
  }
  func.func @transform_9(%arg0: i32) -> (i32, i32) {
    %c0_i32 = arith.constant 0 : i32
    %c0_i32_0 = arith.constant 0 : i32
    %c0_i32_1 = arith.constant 0 : i32
    return %c0_i32, %c0_i32_0 : i32, i32
  }
  func.func @transform_10(%arg0: i32) -> (i32, i32) {
    %c0_i32 = arith.constant 0 : i32
    %c0_i32_0 = arith.constant 0 : i32
    %c0_i32_1 = arith.constant 0 : i32
    return %c0_i32, %c0_i32_0 : i32, i32
  }
  func.func @transform_11(%arg0: i32) -> (i32, i32) {
    %c0_i32 = arith.constant 0 : i32
    %c0_i32_0 = arith.constant 0 : i32
    %c0_i32_1 = arith.constant 0 : i32
    return %c0_i32, %c0_i32_0 : i32, i32
  }
  func.func @transform_12(%arg0: i32) -> (i32, i32) {
    %c0_i32 = arith.constant 0 : i32
    %c0_i32_0 = arith.constant 0 : i32
    %c0_i32_1 = arith.constant 0 : i32
    return %c0_i32, %c0_i32_0 : i32, i32
  }
  func.func @transform_13(%arg0: i32) -> (i32, i32) {
    %c0_i32 = arith.constant 0 : i32
    %c0_i32_0 = arith.constant 0 : i32
    %c0_i32_1 = arith.constant 0 : i32
    return %c0_i32, %c0_i32_0 : i32, i32
  }
  func.func @transform_14(%arg0: i32) -> (i32, i32) {
    %c0_i32 = arith.constant 0 : i32
    %c0_i32_0 = arith.constant 0 : i32
    %c0_i32_1 = arith.constant 0 : i32
    return %c0_i32, %c0_i32_0 : i32, i32
  }
  func.func @transform_15(%arg0: i32) -> (i32, i32) {
    %c0_i32 = arith.constant 0 : i32
    %c0_i32_0 = arith.constant 0 : i32
    %c0_i32_1 = arith.constant 0 : i32
    return %c0_i32, %c0_i32_0 : i32, i32
  }
  func.func @transform_16(%arg0: i32) -> (i32, i32) {
    %c0_i32 = arith.constant 0 : i32
    %c0_i32_0 = arith.constant 0 : i32
    %c0_i32_1 = arith.constant 0 : i32
    return %c0_i32, %c0_i32_0 : i32, i32
  }
  func.func @transform_17(%arg0: i32) -> (i32, i32, i32) {
    %c0_i32 = arith.constant 0 : i32
    %c0_i32_0 = arith.constant 0 : i32
    %c0_i32_1 = arith.constant 0 : i32
    return %arg0, %c0_i32, %c0_i32_0 : i32, i32, i32
  }
}

</mosaic_0001>

<llo_original>
// kernel: tpu_custom_call.1
$region0: #{tpu_custom_call.1}
  #allocation0 [shape = 'u32[]', space=smem, size = 0x4, offset = 0x4, fixed_abs, tag = 'smem constant byte address 0x4 - core index']
  #allocation1 [shape = 'u32[72,128]{1,0:T(1,128)}', space=vmem, size = 0x9000, scoped, tag = 'internal scratch']
  #allocation2 [shape = 'f32[2,8,32]{2,1,0:T(8,128)}', space=vmem, size = 0x2000, scoped, tag = 'scratch operand']
  %s0 = inlined_call_operand.vmem [shape: f32[2,8,32], index: 0, kind: input, shape index: {}]
  %s1 = inlined_call_operand.vmem [shape: bf16[32,32], index: 1, kind: input, shape index: {}]
  %s2 = inlined_call_operand.vmem [shape: f32[1,32], index: 2, kind: input, shape index: {}]
  %s3 = inlined_call_operand.vmem [shape: bf16[32,32], index: 3, kind: input, shape index: {}]
  %s4 = inlined_call_operand.vmem [shape: f32[1,32], index: 4, kind: input, shape index: {}]
  %s5 = inlined_call_operand.hbm [shape: bf16[32,32], index: 5, kind: input, shape index: {}]
  %s6 = inlined_call_operand.vmem [shape: f32[1,32], index: 6, kind: input, shape index: {}]
  %s7 = inlined_call_operand.hbm [shape: bf16[32,32], index: 7, kind: input, shape index: {}]
  %s8 = inlined_call_operand.vmem [shape: f32[1,32], index: 8, kind: input, shape index: {}]
  %s9 = inlined_call_operand.vmem [shape: f32[1,32], index: 9, kind: input, shape index: {}]
  %s10 = inlined_call_operand.vmem [shape: f32[1,32], index: 10, kind: input, shape index: {}]
  %s11 = inlined_call_operand.hbm [shape: bf16[32,64], index: 11, kind: input, shape index: {}]
  %s12 = inlined_call_operand.vmem [shape: f32[1,64], index: 12, kind: input, shape index: {}]
  %s13 = inlined_call_operand.vmem [shape: bf16[64,32], index: 13, kind: input, shape index: {}]
  %s14 = inlined_call_operand.vmem [shape: f32[1,32], index: 14, kind: input, shape index: {}]
  %s15 = inlined_call_operand.vmem [shape: f32[1,32], index: 15, kind: input, shape index: {}]
  %s16 = inlined_call_operand.vmem [shape: f32[1,32], index: 16, kind: input, shape index: {}]
  %s17 = inlined_call_operand.hbm [shape: f32[2,8,32], index: 17, kind: output, shape index: {}]
  %s18 = sld [smem:[#allocation0]]
  $region90: #{tpu_custom_call.1} parent=0
    _
  %s20 = ssub.s32 1, %s18
  %s21 = scalar_select 0, %s20, %s18
  $region1: #{tpu_custom_call.1} parent=0
    #allocation3 [shape = 'u8[8192]{0}', space=vmem, size = 0x2000, scoped, tag = 'input window, operand 5, single buffered']
    #allocation4 [shape = 's32[1]{0}', space=sflag, size = 0x4, scoped, tag = 'scoped memory for tpu_custom_call.1']
    #allocation5 [shape = 's32[1]{0}', space=sflag, size = 0x4, scoped, tag = 'scoped memory for tpu_custom_call.1']
    #allocation6 [shape = 'u8[8192]{0}', space=vmem, size = 0x2000, scoped, tag = 'input window, operand 7, single buffered']
    #allocation7 [shape = 's32[1]{0}', space=sflag, size = 0x4, scoped, tag = 'scoped memory for tpu_custom_call.1']
    #allocation8 [shape = 'u8[8192]{0}', space=vmem, size = 0x2000, scoped, tag = 'input window, operand 11, single buffered']
    #allocation9 [shape = 'u8[8192]{0}', space=vmem, size = 0x2000, scoped, tag = 'output window, operand 0, single buffered']
    %22 = vsyncpa [#allocation4], 0
    %23 = vsyncpa [#allocation7], 0
    %24 = vsyncpa [#allocation5], 0
    // Predicated region
    $region2: #{tpu_custom_call.1} parent=1 // pred_check
      _
    $region3: #{tpu_custom_call.1} parent=1 // pred_check_branch
      %26 = sbr.rel (0) target = $region5
    $region4: #{tpu_custom_call.1} parent=1 // pred_region
      _
    $region5: #{tpu_custom_call.1} parent=1 // pred_fallthru
      _
    // Predicated region
    $region6: #{tpu_custom_call.1} parent=1 // pred_check
      _
    $region7: #{tpu_custom_call.1} parent=1 // pred_check_branch
      %28 = sbr.rel (0) target = $region9
    $region8: #{tpu_custom_call.1} parent=1 // pred_region
      _
    $region9: #{tpu_custom_call.1} parent=1 // pred_fallthru
      _
    // Predicated region
    $region10: #{tpu_custom_call.1} parent=1 // pred_check
      _
    $region11: #{tpu_custom_call.1} parent=1 // pred_check_branch
      %30 = sbr.rel (0) target = $region13
    $region12: #{tpu_custom_call.1} parent=1 // pred_region
      _
    $region13: #{tpu_custom_call.1} parent=1 // pred_fallthru
      _
    // Predicated region
    $region14: #{tpu_custom_call.1} parent=1 // pred_check
      _
    $region15: #{tpu_custom_call.1} parent=1 // pred_check_branch
      %32 = sbr.rel (0) target = $region17
    $region16: #{tpu_custom_call.1} parent=1 // pred_region
      _
    $region17: #{tpu_custom_call.1} parent=1 // pred_fallthru
      _
    // Predicated region
    $region18: #{tpu_custom_call.1} parent=1 // pred_check
      _
    $region19: #{tpu_custom_call.1} parent=1 // pred_check_branch
      %34 = sbr.rel (0) target = $region21
    $region20: #{tpu_custom_call.1} parent=1 // pred_region
      _
    $region21: #{tpu_custom_call.1} parent=1 // pred_fallthru
      _
    // Predicated region
    $region22: #{tpu_custom_call.1} parent=1 // pred_check
      _
    $region23: #{tpu_custom_call.1} parent=1 // pred_check_branch
      %36 = sbr.rel (0) target = $region25
    $region24: #{tpu_custom_call.1} parent=1 // pred_region
      %38 = vsyncadd [#allocation4], 0
      %s39 = sshll.u32 %s5, 4
      %s40 = int_to_ptr.hbm [resolvable:$true] %s39
      %s41 = sshll.u32 [#allocation3], 4
      %s42 = int_to_ptr.vmem [resolvable:$true] %s41
      %47 = dma.hbm_to_vmem [thread:$0]  %s40, 256, %s42, [#allocation4], 64, 64, 4
    $region25: #{tpu_custom_call.1} parent=1 // pred_fallthru
      _
    // Predicated region
    $region26: #{tpu_custom_call.1} parent=1 // pred_check
      _
    $region27: #{tpu_custom_call.1} parent=1 // pred_check_branch
      %49 = sbr.rel (0) target = $region29
    $region28: #{tpu_custom_call.1} parent=1 // pred_region
      _
    $region29: #{tpu_custom_call.1} parent=1 // pred_fallthru
      _
    // Predicated region
    $region30: #{tpu_custom_call.1} parent=1 // pred_check
      _
    $region31: #{tpu_custom_call.1} parent=1 // pred_check_branch
      %51 = sbr.rel (0) target = $region33
    $region32: #{tpu_custom_call.1} parent=1 // pred_region
      %53 = vsyncadd [#allocation7], 0
      %s54 = sshll.u32 %s7, 4
      %s55 = int_to_ptr.hbm [resolvable:$true] %s54
      %s56 = sshll.u32 [#allocation6], 4
      %s57 = int_to_ptr.vmem [resolvable:$true] %s56
      %62 = dma.hbm_to_vmem [thread:$0]  %s55, 256, %s57, [#allocation7], 64, 64, 4
    $region33: #{tpu_custom_call.1} parent=1 // pred_fallthru
      _
    // Predicated region
    $region34: #{tpu_custom_call.1} parent=1 // pred_check
      _
    $region35: #{tpu_custom_call.1} parent=1 // pred_check_branch
      %64 = sbr.rel (0) target = $region37
    $region36: #{tpu_custom_call.1} parent=1 // pred_region
      _
    $region37: #{tpu_custom_call.1} parent=1 // pred_fallthru
      _
    // Predicated region
    $region38: #{tpu_custom_call.1} parent=1 // pred_check
      _
    $region39: #{tpu_custom_call.1} parent=1 // pred_check_branch
      %66 = sbr.rel (0) target = $region41
    $region40: #{tpu_custom_call.1} parent=1 // pred_region
      _
    $region41: #{tpu_custom_call.1} parent=1 // pred_fallthru
      _
    // Predicated region
    $region42: #{tpu_custom_call.1} parent=1 // pred_check
      _
    $region43: #{tpu_custom_call.1} parent=1 // pred_check_branch
      %68 = sbr.rel (0) target = $region45
    $region44: #{tpu_custom_call.1} parent=1 // pred_region
      _
    $region45: #{tpu_custom_call.1} parent=1 // pred_fallthru
      _
    // Predicated region
    $region46: #{tpu_custom_call.1} parent=1 // pred_check
      _
    $region47: #{tpu_custom_call.1} parent=1 // pred_check_branch
      %70 = sbr.rel (0) target = $region49
    $region48: #{tpu_custom_call.1} parent=1 // pred_region
      %72 = vsyncadd [#allocation7], 0
      %s73 = sshll.u32 %s11, 4
      %s74 = int_to_ptr.hbm [resolvable:$true] %s73
      %s75 = sshll.u32 [#allocation8], 4
      %s76 = int_to_ptr.vmem [resolvable:$true] %s75
      %81 = dma.hbm_to_vmem [thread:$0]  %s74, 256, %s76, [#allocation7], 64, 64, 4
    $region49: #{tpu_custom_call.1} parent=1 // pred_fallthru
      _
    // Predicated region
    $region50: #{tpu_custom_call.1} parent=1 // pred_check
      _
    $region51: #{tpu_custom_call.1} parent=1 // pred_check_branch
      %83 = sbr.rel (0) target = $region53
    $region52: #{tpu_custom_call.1} parent=1 // pred_region
      _
    $region53: #{tpu_custom_call.1} parent=1 // pred_fallthru
      _
    // Predicated region
    $region54: #{tpu_custom_call.1} parent=1 // pred_check
      _
    $region55: #{tpu_custom_call.1} parent=1 // pred_check_branch
      %85 = sbr.rel (0) target = $region57
    $region56: #{tpu_custom_call.1} parent=1 // pred_region
      _
    $region57: #{tpu_custom_call.1} parent=1 // pred_fallthru
      _
    // Predicated region
    $region58: #{tpu_custom_call.1} parent=1 // pred_check
      _
    $region59: #{tpu_custom_call.1} parent=1 // pred_check_branch
      %87 = sbr.rel (0) target = $region61
    $region60: #{tpu_custom_call.1} parent=1 // pred_region
      _
    $region61: #{tpu_custom_call.1} parent=1 // pred_fallthru
      _
    // Predicated region
    $region62: #{tpu_custom_call.1} parent=1 // pred_check
      _
    $region63: #{tpu_custom_call.1} parent=1 // pred_check_branch
      %89 = sbr.rel (0) target = $region65
    $region64: #{tpu_custom_call.1} parent=1 // pred_region
      _
    $region65: #{tpu_custom_call.1} parent=1 // pred_fallthru
      _
    // Predicated region
    $region66: #{tpu_custom_call.1} parent=1 // pred_check
      _
    $region67: #{tpu_custom_call.1} parent=1 // pred_check_branch
      %91 = sbr.rel (0) target = $region69
    $region68: #{tpu_custom_call.1} parent=1 // pred_region
      _
    $region69: #{tpu_custom_call.1} parent=1 // pred_fallthru
      _
    // Predicated region
    $region70: #{tpu_custom_call.1} parent=1 // pred_check
      _
    $region71: #{tpu_custom_call.1} parent=1 // pred_check_branch
      %93 = sbr.rel (0) target = $region73
    $region72: #{tpu_custom_call.1} parent=1 // pred_region
      %95 = dma.done [#allocation4], 256
    $region73: #{tpu_custom_call.1} parent=1 // pred_fallthru
      _
    // Predicated region
    $region74: #{tpu_custom_call.1} parent=1 // pred_check
      _
    $region75: #{tpu_custom_call.1} parent=1 // pred_check_branch
      %97 = sbr.rel (0) target = $region77
    $region76: #{tpu_custom_call.1} parent=1 // pred_region
      %99 = dma.done [#allocation7], 256
    $region77: #{tpu_custom_call.1} parent=1 // pred_fallthru
      _
    // Predicated region
    $region78: #{tpu_custom_call.1} parent=1 // pred_check
      _
    $region79: #{tpu_custom_call.1} parent=1 // pred_check_branch
      %101 = sbr.rel (0) target = $region81
    $region80: #{tpu_custom_call.1} parent=1 // pred_region
      %103 = dma.done [#allocation7], 256
    $region81: #{tpu_custom_call.1} parent=1 // pred_fallthru
      _
    %v105 = vld [vmem:[%s0] sm:$0xff]
    %v106 = vld [vmem:[%s0 + $0x8] sm:$0xff]
    %v107 = vpack.c.bf16 %v106, %v105
    %v108 = vld [vmem:[%s1] sm:$0xf]
    %v109 = vld [vmem:[%s1 + $0x4] sm:$0xf]
    %v110 = vld [vmem:[%s1 + $0x8] sm:$0xf]
    %v111 = vld [vmem:[%s1 + $0xc] sm:$0xf]
    %v112 = vld [vmem:[%s2] sm:$0x1]
    %v114 = vperm.slane %v112, 0
    %v120 = vunpack.c.l.b16 %v108
    %v121 = vunpack.c.l.b16 %v109
    %v122 = vunpack.c.l.b16 %v110
    %v123 = vunpack.c.l.b16 %v111
    %v124 = vpack.c.b16 %v121, %v120
    %v125 = vpack.c.b16 %v123, %v122
    %vm128 = vcmask 261120
    %v130 = vsel %vm128, %v107, 0
    %132 = vmatpush.bf16.msra.mxu0 0
    %133 = vmatpush.bf16.msra.mxu0 0
    %134 = vmatpush.bf16.msra.mxu0 0
    %135 = vmatpush.bf16.msra.mxu0 0
    %136 = vmatpush.bf16.msra.mxu0 0
    %137 = vmatpush.bf16.msra.mxu0 0
    %138 = vmatpush.bf16.msra.mxu0 %v125
    %139 = vmatpush.bf16.msra.mxu0 %v124
    %140 = vmatmul.bf16.gmra.mxu0 %v130
    %v141 = vpop.f32.mrf.mxu0
    %v142 = vadd.f32 %v114, %v141
    %v143 = vpop.f32.mrf.mxu0
    %v144 = vadd.f32 %v114, %v143
    %145 = vdwg.mxu0
    %v146 = vmul.f32 %v142, 0.35355338
    %v147 = vmul.f32 %v144, 0.35355338
    %v148 = vld [vmem:[%s3] sm:$0xf]
    %v149 = vld [vmem:[%s3 + $0x4] sm:$0xf]
    %v150 = vld [vmem:[%s3 + $0x8] sm:$0xf]
    %v151 = vld [vmem:[%s3 + $0xc] sm:$0xf]
    %v152 = vld [vmem:[%s4] sm:$0x1]
    %v154 = vperm.slane %v152, 0
    %v160 = vunpack.c.l.b16 %v148
    %v161 = vunpack.c.l.b16 %v149
    %v162 = vunpack.c.l.b16 %v150
    %v163 = vunpack.c.l.b16 %v151
    %v164 = vpack.c.b16 %v161, %v160
    %v165 = vpack.c.b16 %v163, %v162
    %168 = vmatpush.bf16.msra.mxu0 0
    %169 = vmatpush.bf16.msra.mxu0 0
    %170 = vmatpush.bf16.msra.mxu0 0
    %171 = vmatpush.bf16.msra.mxu0 0
    %172 = vmatpush.bf16.msra.mxu0 0
    %173 = vmatpush.bf16.msra.mxu0 0
    %174 = vmatpush.bf16.msra.mxu0 %v165
    %175 = vmatpush.bf16.msra.mxu0 %v164
    %176 = vmatmul.bf16.gmra.mxu0 %v130
    %v177 = vpop.f32.mrf.mxu0
    %v178 = vadd.f32 %v154, %v177
    %v179 = vpop.f32.mrf.mxu0
    %v180 = vadd.f32 %v154, %v179
    %181 = vdwg.mxu0
    %v182 = vld [vmem:[#allocation3] sm:$0xf]
    %v183 = vld [vmem:[#allocation3 + $0x4] sm:$0xf]
    %v184 = vld [vmem:[#allocation3 + $0x8] sm:$0xf]
    %v185 = vld [vmem:[#allocation3 + $0xc] sm:$0xf]
    %v186 = vld [vmem:[%s6] sm:$0x1]
    %v188 = vperm.slane %v186, 0
    %v194 = vunpack.c.l.b16 %v182
    %v195 = vunpack.c.l.b16 %v183
    %v196 = vunpack.c.l.b16 %v184
    %v197 = vunpack.c.l.b16 %v185
    %v198 = vpack.c.b16 %v195, %v194
    %v199 = vpack.c.b16 %v197, %v196
    %202 = vmatpush.bf16.msra.mxu0 0
    %203 = vmatpush.bf16.msra.mxu0 0
    %204 = vmatpush.bf16.msra.mxu0 0
    %205 = vmatpush.bf16.msra.mxu0 0
    %206 = vmatpush.bf16.msra.mxu0 0
    %207 = vmatpush.bf16.msra.mxu0 0
    %208 = vmatpush.bf16.msra.mxu0 %v199
    %209 = vmatpush.bf16.msra.mxu0 %v198
    %210 = vmatmul.bf16.gmra.mxu0 %v130
    %v211 = vpop.f32.mrf.mxu0
    %v212 = vadd.f32 %v188, %v211
    %v213 = vpop.f32.mrf.mxu0
    %v214 = vadd.f32 %v188, %v213
    %215 = vdwg.mxu0
    %v216 = vpack.c.bf16 %v146, %v146
    %v217 = vpack.c.bf16 %v147, %v147
    %v218 = vpack.c.bf16 %v178, %v178
    %v219 = vpack.c.bf16 %v180, %v180
    %v220 = vpack.c.bf16 %v212, %v212
    %v221 = vpack.c.bf16 %v214, %v214
    %vm222 = vcmask 64512
    %v224 = vsel %vm222, %v216, 0
    %v227 = vsel %vm222, %v218, 0
    %229 = vmatpush.bf16.xpose.msra.mxu0 0
    %230 = vmatpush.bf16.xpose.msra.mxu0 0
    %231 = vmatpush.bf16.xpose.msra.mxu0 0
    %232 = vmatpush.bf16.xpose.msra.mxu0 0
    %233 = vmatpush.bf16.xpose.msra.mxu0 0
    %234 = vmatpush.bf16.xpose.msra.mxu0 0
    %235 = vmatpush.bf16.xpose.msra.mxu0 0
    %236 = vmatpush.bf16.xpose.msra.mxu0 %v227
    %237 = vmatmul.bf16.gmra.mxu0 %v224
    %v238 = vpop.f32.mrf.mxu0
    %v239 = vadd.f32 0.0, %v238
    %v240 = vpop.f32.mrf.mxu0
    %241 = vdwg.mxu0
    %v243 = vsel %vm222, %v217, 0
    %v246 = vsel %vm222, %v219, 0
    %248 = vmatpush.bf16.xpose.msra.mxu0 0
    %249 = vmatpush.bf16.xpose.msra.mxu0 0
    %250 = vmatpush.bf16.xpose.msra.mxu0 0
    %251 = vmatpush.bf16.xpose.msra.mxu0 0
    %252 = vmatpush.bf16.xpose.msra.mxu0 0
    %253 = vmatpush.bf16.xpose.msra.mxu0 0
    %254 = vmatpush.bf16.xpose.msra.mxu0 0
    %255 = vmatpush.bf16.xpose.msra.mxu0 %v246
    %256 = vmatmul.bf16.gmra.mxu0 %v243
    %v257 = vpop.f32.mrf.mxu0
    %v258 = vadd.f32 0.0, %v257
    %v259 = vpop.f32.mrf.mxu0
    %260 = vdwg.mxu0
    %v261 = vsel %vm222, %v239, -inf
    %262 = vmax.xlane.f32.xlu0 %v261
    %v263 = vpop.xlane.xlu0 %262
    %v264 = vsel %vm222, %v258, -inf
    %265 = vmax.xlane.f32.xlu0 %v264
    %v266 = vpop.xlane.xlu0 %265
    %v267 = vsub.f32 %v239, %v263
    %v268 = vsub.f32 %v258, %v266
    %v269 = vmul.f32 %v267, 1.442695
    %v270 = vpow.pop %v269
    %v271 = vmul.f32 %v268, 1.442695
    %v272 = vpow.pop %v271
    %v273 = vsel %vm222, %v270, 0.0
    %274 = vadd.xlane.f32.xlu0 %v273
    %v275 = vpop.xlane.xlu0 %274
    %v276 = vsel %vm222, %v272, 0.0
    %277 = vadd.xlane.f32.xlu0 %v276
    %v278 = vpop.xlane.xlu0 %277
    %v279 = vrcp.pop %v275
    %v280 = vrcp.pop %v278
    %v281 = vmul.f32 %v270, %v279
    %v282 = vmul.f32 %v272, %v280
    %v283 = vpack.c.bf16 %v281, %v281
    %v284 = vpack.c.bf16 %v282, %v282
    %v286 = vsel %vm222, %v283, 0
    %vm288 = vcmask 1043456
    %v290 = vsel %vm288, %v220, 0
    %292 = vmatpush.bf16.msra.mxu0 0
    %293 = vmatpush.bf16.msra.mxu0 0
    %294 = vmatpush.bf16.msra.mxu0 0
    %295 = vmatpush.bf16.msra.mxu0 0
    %296 = vmatpush.bf16.msra.mxu0 0
    %297 = vmatpush.bf16.msra.mxu0 0
    %298 = vmatpush.bf16.msra.mxu0 0
    %299 = vmatpush.bf16.msra.mxu0 %v290
    %300 = vmatmul.bf16.gmra.mxu0 %v286
    %v301 = vpop.f32.mrf.mxu0
    %v302 = vadd.f32 0.0, %v301
    %v303 = vpop.f32.mrf.mxu0
    %304 = vdwg.mxu0
    %v306 = vsel %vm222, %v284, 0
    %v309 = vsel %vm288, %v221, 0
    %311 = vmatpush.bf16.msra.mxu0 0
    %312 = vmatpush.bf16.msra.mxu0 0
    %313 = vmatpush.bf16.msra.mxu0 0
    %314 = vmatpush.bf16.msra.mxu0 0
    %315 = vmatpush.bf16.msra.mxu0 0
    %316 = vmatpush.bf16.msra.mxu0 0
    %317 = vmatpush.bf16.msra.mxu0 0
    %318 = vmatpush.bf16.msra.mxu0 %v309
    %319 = vmatmul.bf16.gmra.mxu0 %v306
    %v320 = vpop.f32.mrf.mxu0
    %v321 = vadd.f32 0.0, %v320
    %v322 = vpop.f32.mrf.mxu0
    %323 = vdwg.mxu0
    %324 = vst.msk [vmem:[#allocation2] sm:$0xff] %vm222, %v302
    %325 = vst.msk [vmem:[#allocation2 + $0x8] sm:$0xff] %vm222, %v321
    %v327 = vunpack.c.l.b16 %v216
    %v328 = vpack.c.b16 %v327, %v327
    %329 = vrot.lane.b32.xlu0 %v328, 120
    %v330 = vpop.permute.xlu0 %329
    %v332 = vunpack.c.l.b16 %v218
    %v333 = vpack.c.b16 %v332, %v332
    %334 = vrot.lane.b32.xlu0 %v333, 120
    %v335 = vpop.permute.xlu0 %334
    %v337 = vsel %vm222, %v330, 0
    %v340 = vsel %vm222, %v335, 0
    %342 = vmatpush.bf16.xpose.msra.mxu0 0
    %343 = vmatpush.bf16.xpose.msra.mxu0 0
    %344 = vmatpush.bf16.xpose.msra.mxu0 0
    %345 = vmatpush.bf16.xpose.msra.mxu0 0
    %346 = vmatpush.bf16.xpose.msra.mxu0 0
    %347 = vmatpush.bf16.xpose.msra.mxu0 0
    %348 = vmatpush.bf16.xpose.msra.mxu0 0
    %349 = vmatpush.bf16.xpose.msra.mxu0 %v340
    %350 = vmatmul.bf16.gmra.mxu0 %v337
    %v351 = vpop.f32.mrf.mxu0
    %v352 = vadd.f32 0.0, %v351
    %v353 = vpop.f32.mrf.mxu0
    %354 = vdwg.mxu0
    %v356 = vunpack.c.l.b16 %v217
    %v357 = vpack.c.b16 %v356, %v356
    %358 = vrot.lane.b32.xlu0 %v357, 120
    %v359 = vpop.permute.xlu0 %358
    %v361 = vunpack.c.l.b16 %v219
    %v362 = vpack.c.b16 %v361, %v361
    %363 = vrot.lane.b32.xlu0 %v362, 120
    %v364 = vpop.permute.xlu0 %363
    %v366 = vsel %vm222, %v359, 0
    %v369 = vsel %vm222, %v364, 0
    %371 = vmatpush.bf16.xpose.msra.mxu0 0
    %372 = vmatpush.bf16.xpose.msra.mxu0 0
    %373 = vmatpush.bf16.xpose.msra.mxu0 0
    %374 = vmatpush.bf16.xpose.msra.mxu0 0
    %375 = vmatpush.bf16.xpose.msra.mxu0 0
    %376 = vmatpush.bf16.xpose.msra.mxu0 0
    %377 = vmatpush.bf16.xpose.msra.mxu0 0
    %378 = vmatpush.bf16.xpose.msra.mxu0 %v369
    %379 = vmatmul.bf16.gmra.mxu0 %v366
    %v380 = vpop.f32.mrf.mxu0
    %v381 = vadd.f32 0.0, %v380
    %v382 = vpop.f32.mrf.mxu0
    %383 = vdwg.mxu0
    %v384 = vsel %vm222, %v352, -inf
    %385 = vmax.xlane.f32.xlu0 %v384
    %v386 = vpop.xlane.xlu0 %385
    %v387 = vsel %vm222, %v381, -inf
    %388 = vmax.xlane.f32.xlu0 %v387
    %v389 = vpop.xlane.xlu0 %388
    %v390 = vsub.f32 %v352, %v386
    %v391 = vsub.f32 %v381, %v389
    %v392 = vmul.f32 %v390, 1.442695
    %v393 = vpow.pop %v392
    %v394 = vmul.f32 %v391, 1.442695
    %v395 = vpow.pop %v394
    %v396 = vsel %vm222, %v393, 0.0
    %397 = vadd.xlane.f32.xlu0 %v396
    %v398 = vpop.xlane.xlu0 %397
    %v399 = vsel %vm222, %v395, 0.0
    %400 = vadd.xlane.f32.xlu0 %v399
    %v401 = vpop.xlane.xlu0 %400
    %v402 = vrcp.pop %v398
    %v403 = vrcp.pop %v401
    %v404 = vmul.f32 %v393, %v402
    %v405 = vmul.f32 %v395, %v403
    %v406 = vpack.c.bf16 %v404, %v404
    %v407 = vpack.c.bf16 %v405, %v405
    %v409 = vunpack.c.l.b16 %v220
    %v410 = vpack.c.b16 %v409, %v409
    %411 = vrot.lane.b32.xlu0 %v410, 120
    %v412 = vpop.permute.xlu0 %411
    %v414 = vsel %vm222, %v406, 0
    %v417 = vsel %vm288, %v412, 0
    %419 = vmatpush.bf16.msra.mxu0 0
    %420 = vmatpush.bf16.msra.mxu0 0
    %421 = vmatpush.bf16.msra.mxu0 0
    %422 = vmatpush.bf16.msra.mxu0 0
    %423 = vmatpush.bf16.msra.mxu0 0
    %424 = vmatpush.bf16.msra.mxu0 0
    %425 = vmatpush.bf16.msra.mxu0 0
    %426 = vmatpush.bf16.msra.mxu0 %v417
    %427 = vmatmul.bf16.gmra.mxu0 %v414
    %v428 = vpop.f32.mrf.mxu0
    %v429 = vadd.f32 0.0, %v428
    %v430 = vpop.f32.mrf.mxu0
    %431 = vdwg.mxu0
    %v433 = vunpack.c.l.b16 %v221
    %v434 = vpack.c.b16 %v433, %v433
    %435 = vrot.lane.b32.xlu0 %v434, 120
    %v436 = vpop.permute.xlu0 %435
    %v438 = vsel %vm222, %v407, 0
    %v441 = vsel %vm288, %v436, 0
    %443 = vmatpush.bf16.msra.mxu0 0
    %444 = vmatpush.bf16.msra.mxu0 0
    %445 = vmatpush.bf16.msra.mxu0 0
    %446 = vmatpush.bf16.msra.mxu0 0
    %447 = vmatpush.bf16.msra.mxu0 0
    %448 = vmatpush.bf16.msra.mxu0 0
    %449 = vmatpush.bf16.msra.mxu0 0
    %450 = vmatpush.bf16.msra.mxu0 %v441
    %451 = vmatmul.bf16.gmra.mxu0 %v438
    %v452 = vpop.f32.mrf.mxu0
    %v453 = vadd.f32 0.0, %v452
    %v454 = vpop.f32.mrf.mxu0
    %455 = vdwg.mxu0
    %458 = vrot.lane.b32.xlu0 %v429, 8
    %v459 = vpop.permute.xlu0 %458
    %460 = vrot.lane.b32.xlu0 %v453, 8
    %v461 = vpop.permute.xlu0 %460
    %vm464 = vcmask 130112
    %465 = vst.msk [vmem:[#allocation2] sm:$0xff] %vm464, %v459
    %466 = vst.msk [vmem:[#allocation2 + $0x8] sm:$0xff] %vm464, %v461
    %467 = vrot.lane.b32.xlu0 %v328, 112
    %v468 = vpop.permute.xlu0 %467
    %469 = vrot.lane.b32.xlu0 %v333, 112
    %v470 = vpop.permute.xlu0 %469
    %v472 = vsel %vm222, %v468, 0
    %v475 = vsel %vm222, %v470, 0
    %477 = vmatpush.bf16.xpose.msra.mxu0 0
    %478 = vmatpush.bf16.xpose.msra.mxu0 0
    %479 = vmatpush.bf16.xpose.msra.mxu0 0
    %480 = vmatpush.bf16.xpose.msra.mxu0 0
    %481 = vmatpush.bf16.xpose.msra.mxu0 0
    %482 = vmatpush.bf16.xpose.msra.mxu0 0
    %483 = vmatpush.bf16.xpose.msra.mxu0 0
    %484 = vmatpush.bf16.xpose.msra.mxu0 %v475
    %485 = vmatmul.bf16.gmra.mxu0 %v472
    %v486 = vpop.f32.mrf.mxu0
    %v487 = vadd.f32 0.0, %v486
    %v488 = vpop.f32.mrf.mxu0
    %489 = vdwg.mxu0
    %490 = vrot.lane.b32.xlu0 %v357, 112
    %v491 = vpop.permute.xlu0 %490
    %492 = vrot.lane.b32.xlu0 %v362, 112
    %v493 = vpop.permute.xlu0 %492
    %v495 = vsel %vm222, %v491, 0
    %v498 = vsel %vm222, %v493, 0
    %500 = vmatpush.bf16.xpose.msra.mxu0 0
    %501 = vmatpush.bf16.xpose.msra.mxu0 0
    %502 = vmatpush.bf16.xpose.msra.mxu0 0
    %503 = vmatpush.bf16.xpose.msra.mxu0 0
    %504 = vmatpush.bf16.xpose.msra.mxu0 0
    %505 = vmatpush.bf16.xpose.msra.mxu0 0
    %506 = vmatpush.bf16.xpose.msra.mxu0 0
    %507 = vmatpush.bf16.xpose.msra.mxu0 %v498
    %508 = vmatmul.bf16.gmra.mxu0 %v495
    %v509 = vpop.f32.mrf.mxu0
    %v510 = vadd.f32 0.0, %v509
    %v511 = vpop.f32.mrf.mxu0
    %512 = vdwg.mxu0
    %v513 = vsel %vm222, %v487, -inf
    %514 = vmax.xlane.f32.xlu0 %v513
    %v515 = vpop.xlane.xlu0 %514
    %v516 = vsel %vm222, %v510, -inf
    %517 = vmax.xlane.f32.xlu0 %v516
    %v518 = vpop.xlane.xlu0 %517
    %v519 = vsub.f32 %v487, %v515
    %v520 = vsub.f32 %v510, %v518
    %v521 = vmul.f32 %v519, 1.442695
    %v522 = vpow.pop %v521
    %v523 = vmul.f32 %v520, 1.442695
    %v524 = vpow.pop %v523
    %v525 = vsel %vm222, %v522, 0.0
    %526 = vadd.xlane.f32.xlu0 %v525
    %v527 = vpop.xlane.xlu0 %526
    %v528 = vsel %vm222, %v524, 0.0
    %529 = vadd.xlane.f32.xlu0 %v528
    %v530 = vpop.xlane.xlu0 %529
    %v531 = vrcp.pop %v527
    %v532 = vrcp.pop %v530
    %v533 = vmul.f32 %v522, %v531
    %v534 = vmul.f32 %v524, %v532
    %v535 = vpack.c.bf16 %v533, %v533
    %v536 = vpack.c.bf16 %v534, %v534
    %537 = vrot.lane.b32.xlu0 %v410, 112
    %v538 = vpop.permute.xlu0 %537
    %v540 = vsel %vm222, %v535, 0
    %v543 = vsel %vm288, %v538, 0
    %545 = vmatpush.bf16.msra.mxu0 0
    %546 = vmatpush.bf16.msra.mxu0 0
    %547 = vmatpush.bf16.msra.mxu0 0
    %548 = vmatpush.bf16.msra.mxu0 0
    %549 = vmatpush.bf16.msra.mxu0 0
    %550 = vmatpush.bf16.msra.mxu0 0
    %551 = vmatpush.bf16.msra.mxu0 0
    %552 = vmatpush.bf16.msra.mxu0 %v543
    %553 = vmatmul.bf16.gmra.mxu0 %v540
    %v554 = vpop.f32.mrf.mxu0
    %v555 = vadd.f32 0.0, %v554
    %v556 = vpop.f32.mrf.mxu0
    %557 = vdwg.mxu0
    %558 = vrot.lane.b32.xlu0 %v434, 112
    %v559 = vpop.permute.xlu0 %558
    %v561 = vsel %vm222, %v536, 0
    %v564 = vsel %vm288, %v559, 0
    %566 = vmatpush.bf16.msra.mxu0 0
    %567 = vmatpush.bf16.msra.mxu0 0
    %568 = vmatpush.bf16.msra.mxu0 0
    %569 = vmatpush.bf16.msra.mxu0 0
    %570 = vmatpush.bf16.msra.mxu0 0
    %571 = vmatpush.bf16.msra.mxu0 0
    %572 = vmatpush.bf16.msra.mxu0 0
    %573 = vmatpush.bf16.msra.mxu0 %v564
    %574 = vmatmul.bf16.gmra.mxu0 %v561
    %v575 = vpop.f32.mrf.mxu0
    %v576 = vadd.f32 0.0, %v575
    %v577 = vpop.f32.mrf.mxu0
    %578 = vdwg.mxu0
    %581 = vrot.lane.b32.xlu0 %v555, 16
    %v582 = vpop.permute.xlu0 %581
    %583 = vrot.lane.b32.xlu0 %v576, 16
    %v584 = vpop.permute.xlu0 %583
    %vm587 = vcmask 195712
    %588 = vst.msk [vmem:[#allocation2] sm:$0xff] %vm587, %v582
    %589 = vst.msk [vmem:[#allocation2 + $0x8] sm:$0xff] %vm587, %v584
    %590 = vrot.lane.b32.xlu0 %v328, 104
    %v591 = vpop.permute.xlu0 %590
    %592 = vrot.lane.b32.xlu0 %v333, 104
    %v593 = vpop.permute.xlu0 %592
    %v595 = vsel %vm222, %v591, 0
    %v598 = vsel %vm222, %v593, 0
    %600 = vmatpush.bf16.xpose.msra.mxu0 0
    %601 = vmatpush.bf16.xpose.msra.mxu0 0
    %602 = vmatpush.bf16.xpose.msra.mxu0 0
    %603 = vmatpush.bf16.xpose.msra.mxu0 0
    %604 = vmatpush.bf16.xpose.msra.mxu0 0
    %605 = vmatpush.bf16.xpose.msra.mxu0 0
    %606 = vmatpush.bf16.xpose.msra.mxu0 0
    %607 = vmatpush.bf16.xpose.msra.mxu0 %v598
    %608 = vmatmul.bf16.gmra.mxu0 %v595
    %v609 = vpop.f32.mrf.mxu0
    %v610 = vadd.f32 0.0, %v609
    %v611 = vpop.f32.mrf.mxu0
    %612 = vdwg.mxu0
    %613 = vrot.lane.b32.xlu0 %v357, 104
    %v614 = vpop.permute.xlu0 %613
    %615 = vrot.lane.b32.xlu0 %v362, 104
    %v616 = vpop.permute.xlu0 %615
    %v618 = vsel %vm222, %v614, 0
    %v621 = vsel %vm222, %v616, 0
    %623 = vmatpush.bf16.xpose.msra.mxu0 0
    %624 = vmatpush.bf16.xpose.msra.mxu0 0
    %625 = vmatpush.bf16.xpose.msra.mxu0 0
    %626 = vmatpush.bf16.xpose.msra.mxu0 0
    %627 = vmatpush.bf16.xpose.msra.mxu0 0
    %628 = vmatpush.bf16.xpose.msra.mxu0 0
    %629 = vmatpush.bf16.xpose.msra.mxu0 0
    %630 = vmatpush.bf16.xpose.msra.mxu0 %v621
    %631 = vmatmul.bf16.gmra.mxu0 %v618
    %v632 = vpop.f32.mrf.mxu0
    %v633 = vadd.f32 0.0, %v632
    %v634 = vpop.f32.mrf.mxu0
    %635 = vdwg.mxu0
    %v636 = vsel %vm222, %v610, -inf
    %637 = vmax.xlane.f32.xlu0 %v636
    %v638 = vpop.xlane.xlu0 %637
    %v639 = vsel %vm222, %v633, -inf
    %640 = vmax.xlane.f32.xlu0 %v639
    %v641 = vpop.xlane.xlu0 %640
    %v642 = vsub.f32 %v610, %v638
    %v643 = vsub.f32 %v633, %v641
    %v644 = vmul.f32 %v642, 1.442695
    %v645 = vpow.pop %v644
    %v646 = vmul.f32 %v643, 1.442695
    %v647 = vpow.pop %v646
    %v648 = vsel %vm222, %v645, 0.0
    %649 = vadd.xlane.f32.xlu0 %v648
    %v650 = vpop.xlane.xlu0 %649
    %v651 = vsel %vm222, %v647, 0.0
    %652 = vadd.xlane.f32.xlu0 %v651
    %v653 = vpop.xlane.xlu0 %652
    %v654 = vrcp.pop %v650
    %v655 = vrcp.pop %v653
    %v656 = vmul.f32 %v645, %v654
    %v657 = vmul.f32 %v647, %v655
    %v658 = vpack.c.bf16 %v656, %v656
    %v659 = vpack.c.bf16 %v657, %v657
    %660 = vrot.lane.b32.xlu0 %v410, 104
    %v661 = vpop.permute.xlu0 %660
    %v663 = vsel %vm222, %v658, 0
    %v666 = vsel %vm288, %v661, 0
    %668 = vmatpush.bf16.msra.mxu0 0
    %669 = vmatpush.bf16.msra.mxu0 0
    %670 = vmatpush.bf16.msra.mxu0 0
    %671 = vmatpush.bf16.msra.mxu0 0
    %672 = vmatpush.bf16.msra.mxu0 0
    %673 = vmatpush.bf16.msra.mxu0 0
    %674 = vmatpush.bf16.msra.mxu0 0
    %675 = vmatpush.bf16.msra.mxu0 %v666
    %676 = vmatmul.bf16.gmra.mxu0 %v663
    %v677 = vpop.f32.mrf.mxu0
    %v678 = vadd.f32 0.0, %v677
    %v679 = vpop.f32.mrf.mxu0
    %680 = vdwg.mxu0
    %681 = vrot.lane.b32.xlu0 %v434, 104
    %v682 = vpop.permute.xlu0 %681
    %v684 = vsel %vm222, %v659, 0
    %v687 = vsel %vm288, %v682, 0
    %689 = vmatpush.bf16.msra.mxu0 0
    %690 = vmatpush.bf16.msra.mxu0 0
    %691 = vmatpush.bf16.msra.mxu0 0
    %692 = vmatpush.bf16.msra.mxu0 0
    %693 = vmatpush.bf16.msra.mxu0 0
    %694 = vmatpush.bf16.msra.mxu0 0
    %695 = vmatpush.bf16.msra.mxu0 0
    %696 = vmatpush.bf16.msra.mxu0 %v687
    %697 = vmatmul.bf16.gmra.mxu0 %v684
    %v698 = vpop.f32.mrf.mxu0
    %v699 = vadd.f32 0.0, %v698
    %v700 = vpop.f32.mrf.mxu0
    %701 = vdwg.mxu0
    %704 = vrot.lane.b32.xlu0 %v678, 24
    %v705 = vpop.permute.xlu0 %704
    %706 = vrot.lane.b32.xlu0 %v699, 24
    %v707 = vpop.permute.xlu0 %706
    %vm710 = vcmask 261312
    %711 = vst.msk [vmem:[#allocation2] sm:$0xff] %vm710, %v705
    %712 = vst.msk [vmem:[#allocation2 + $0x8] sm:$0xff] %vm710, %v707
    %v713 = vld [vmem:[#allocation2] sm:$0xff]
    %v714 = vld [vmem:[#allocation2 + $0x8] sm:$0xff]
    %v715 = vpack.c.bf16 %v714, %v713
    %v716 = vld [vmem:[#allocation6] sm:$0xf]
    %v717 = vld [vmem:[#allocation6 + $0x4] sm:$0xf]
    %v718 = vld [vmem:[#allocation6 + $0x8] sm:$0xf]
    %v719 = vld [vmem:[#allocation6 + $0xc] sm:$0xf]
    %v720 = vld [vmem:[%s8] sm:$0x1]
    %v722 = vperm.slane %v720, 0
    %v728 = vunpack.c.l.b16 %v716
    %v729 = vunpack.c.l.b16 %v717
    %v730 = vunpack.c.l.b16 %v718
    %v731 = vunpack.c.l.b16 %v719
    %v732 = vpack.c.b16 %v729, %v728
    %v733 = vpack.c.b16 %v731, %v730
    %v737 = vsel %vm128, %v715, 0
    %739 = vmatpush.bf16.msra.mxu0 0
    %740 = vmatpush.bf16.msra.mxu0 0
    %741 = vmatpush.bf16.msra.mxu0 0
    %742 = vmatpush.bf16.msra.mxu0 0
    %743 = vmatpush.bf16.msra.mxu0 0
    %744 = vmatpush.bf16.msra.mxu0 0
    %745 = vmatpush.bf16.msra.mxu0 %v733
    %746 = vmatpush.bf16.msra.mxu0 %v732
    %747 = vmatmul.bf16.gmra.mxu0 %v737
    %v748 = vpop.f32.mrf.mxu0
    %v749 = vadd.f32 %v722, %v748
    %v750 = vpop.f32.mrf.mxu0
    %v751 = vadd.f32 %v722, %v750
    %752 = vdwg.mxu0
    %v753 = vadd.f32 %v749, %v105
    %v754 = vadd.f32 %v751, %v106
    %v755 = vsel %vm128, %v753, 0.0
    %756 = vadd.xlane.f32.xlu0 %v755
    %v757 = vpop.xlane.xlu0 %756
    %v758 = vsel %vm128, %v754, 0.0
    %759 = vadd.xlane.f32.xlu0 %v758
    %v760 = vpop.xlane.xlu0 %759
    %v761 = vrcp.pop 32.0
    %v762 = vmul.f32 32.0, %v761
    %v763 = vsub.f32 1.0, %v762
    %v764 = vmul.f32 %v761, %v763
    %v765 = vadd.f32 %v761, %v764
    %vm766 = vweird.f32 %v761
    %v767 = vsel %vm766, %v761, %v765
    %v768 = vmul.f32 %v757, %v767
    %v769 = vmul.f32 %v760, %v767
    %v770 = vsub.f32 %v753, %v768
    %v771 = vsub.f32 %v754, %v769
    %v772 = vmul.f32 %v770, %v770
    %v773 = vmul.f32 %v771, %v771
    %v774 = vsel %vm128, %v772, 0.0
    %775 = vadd.xlane.f32.xlu0 %v774
    %v776 = vpop.xlane.xlu0 %775
    %v777 = vsel %vm128, %v773, 0.0
    %778 = vadd.xlane.f32.xlu0 %v777
    %v779 = vpop.xlane.xlu0 %778
    %v780 = vmul.f32 %v776, 0.032258064
    %v781 = vmul.f32 %v779, 0.032258064
    %v782 = vrsqrt.pop %v780
    %v783 = vmul.f32 %v782, %v780
    %v784 = vmul.f32 %v783, %v782
    %v785 = vmul.f32 0.5, %v784
    %v786 = vsub.f32 1.5, %v785
    %v787 = vmul.f32 %v782, %v786
    %v788 = vmul.f32 %v780, %v787
    %vm789 = vcmp.eq.f32.partialorder %v780, inf
    %v790 = vsel %vm789, %v780, %v788
    %vm791 = vcmp.eq.f32.partialorder %v780, 0.0
    %v792 = vand.u32 %v780, 2147483648
    %v793 = vsel %vm791, %v792, %v790
    %v794 = vrsqrt.pop %v781
    %v795 = vmul.f32 %v794, %v781
    %v796 = vmul.f32 %v795, %v794
    %v797 = vmul.f32 0.5, %v796
    %v798 = vsub.f32 1.5, %v797
    %v799 = vmul.f32 %v794, %v798
    %v800 = vmul.f32 %v781, %v799
    %vm801 = vcmp.eq.f32.partialorder %v781, inf
    %v802 = vsel %vm801, %v781, %v800
    %vm803 = vcmp.eq.f32.partialorder %v781, 0.0
    %v804 = vand.u32 %v781, 2147483648
    %v805 = vsel %vm803, %v804, %v802
    %v806 = vadd.f32 %v793, 1e-12
    %v807 = vadd.f32 %v805, 1e-12
    %v808 = vrcp.pop %v806
    %v809 = vrcp.pop %v807
    %v810 = vld [vmem:[%s9] sm:$0x1]
    %v811 = vmul.f32 %v770, %v808
    %v812 = vmul.f32 %v771, %v809
    %v814 = vperm.slane %v810, 0
    %v816 = vmul.f32 %v814, %v811
    %v817 = vmul.f32 %v814, %v812
    %v818 = vld [vmem:[%s10] sm:$0x1]
    %v820 = vperm.slane %v818, 0
    %v822 = vadd.f32 %v816, %v820
    %v823 = vadd.f32 %v817, %v820
    %v824 = vpack.c.bf16 %v823, %v822
    %v825 = vld [vmem:[#allocation8] sm:$0xf]
    %v826 = vld [vmem:[#allocation8 + $0x4] sm:$0xf]
    %v827 = vld [vmem:[#allocation8 + $0x8] sm:$0xf]
    %v828 = vld [vmem:[#allocation8 + $0xc] sm:$0xf]
    %v829 = vld [vmem:[%s12] sm:$0x1]
    %v831 = vperm.slane %v829, 0
    %v837 = vunpack.c.l.b16 %v825
    %v838 = vunpack.c.l.b16 %v826
    %v839 = vunpack.c.l.b16 %v827
    %v840 = vunpack.c.l.b16 %v828
    %v841 = vpack.c.b16 %v838, %v837
    %v842 = vpack.c.b16 %v840, %v839
    %v846 = vsel %vm128, %v824, 0
    %848 = vmatpush.bf16.msra.mxu0 0
    %849 = vmatpush.bf16.msra.mxu0 0
    %850 = vmatpush.bf16.msra.mxu0 0
    %851 = vmatpush.bf16.msra.mxu0 0
    %852 = vmatpush.bf16.msra.mxu0 0
    %853 = vmatpush.bf16.msra.mxu0 0
    %854 = vmatpush.bf16.msra.mxu0 %v842
    %855 = vmatpush.bf16.msra.mxu0 %v841
    %856 = vmatmul.bf16.gmra.mxu0 %v846
    %v857 = vpop.f32.mrf.mxu0
    %v858 = vadd.f32 %v831, %v857
    %v859 = vpop.f32.mrf.mxu0
    %v860 = vadd.f32 %v831, %v859
    %861 = vdwg.mxu0
    %v862 = vmax.f32 %v858, 0.0
    %v863 = vmax.f32 %v860, 0.0
    %v864 = vpack.c.bf16 %v863, %v862
    %v865 = vld [vmem:[%s13] sm:$0xf]
    %v866 = vld [vmem:[%s13 + $0x4] sm:$0xf]
    %v867 = vld [vmem:[%s13 + $0x8] sm:$0xf]
    %v868 = vld [vmem:[%s13 + $0xc] sm:$0xf]
    %v869 = vld [vmem:[%s13 + $0x10] sm:$0xf]
    %v870 = vld [vmem:[%s13 + $0x14] sm:$0xf]
    %v871 = vld [vmem:[%s13 + $0x18] sm:$0xf]
    %v872 = vld [vmem:[%s13 + $0x1c] sm:$0xf]
    %v873 = vld [vmem:[%s14] sm:$0x1]
    %v875 = vperm.slane %v873, 0
    %v885 = vunpack.c.l.b16 %v865
    %v886 = vunpack.c.l.b16 %v866
    %v887 = vunpack.c.l.b16 %v867
    %v888 = vunpack.c.l.b16 %v868
    %v889 = vunpack.c.l.b16 %v869
    %v890 = vunpack.c.l.b16 %v870
    %v891 = vunpack.c.l.b16 %v871
    %v892 = vunpack.c.l.b16 %v872
    %v893 = vpack.c.b16 %v886, %v885
    %v894 = vpack.c.b16 %v888, %v887
    %v895 = vpack.c.b16 %v890, %v889
    %v896 = vpack.c.b16 %v892, %v891
    %vm901 = vcmask 523264
    %v903 = vsel %vm901, %v864, 0
    %905 = vmatpush.bf16.msra.mxu0 0
    %906 = vmatpush.bf16.msra.mxu0 0
    %907 = vmatpush.bf16.msra.mxu0 0
    %908 = vmatpush.bf16.msra.mxu0 0
    %909 = vmatpush.bf16.msra.mxu0 %v896
    %910 = vmatpush.bf16.msra.mxu0 %v895
    %911 = vmatpush.bf16.msra.mxu0 %v894
    %912 = vmatpush.bf16.msra.mxu0 %v893
    %913 = vmatmul.bf16.gmra.mxu0 %v903
    %v914 = vpop.f32.mrf.mxu0
    %v915 = vadd.f32 %v875, %v914
    %v916 = vpop.f32.mrf.mxu0
    %v917 = vadd.f32 %v875, %v916
    %918 = vdwg.mxu0
    %v919 = vadd.f32 %v915, %v822
    %v920 = vadd.f32 %v917, %v823
    %v921 = vsel %vm128, %v919, 0.0
    %922 = vadd.xlane.f32.xlu0 %v921
    %v923 = vpop.xlane.xlu0 %922
    %v924 = vsel %vm128, %v920, 0.0
    %925 = vadd.xlane.f32.xlu0 %v924
    %v926 = vpop.xlane.xlu0 %925
    %v927 = vmul.f32 %v923, %v767
    %v928 = vmul.f32 %v926, %v767
    %v929 = vsub.f32 %v919, %v927
    %v930 = vsub.f32 %v920, %v928
    %v931 = vmul.f32 %v929, %v929
    %v932 = vmul.f32 %v930, %v930
    %v933 = vsel %vm128, %v931, 0.0
    %934 = vadd.xlane.f32.xlu0 %v933
    %v935 = vpop.xlane.xlu0 %934
    %v936 = vsel %vm128, %v932, 0.0
    %937 = vadd.xlane.f32.xlu0 %v936
    %v938 = vpop.xlane.xlu0 %937
    %v939 = vmul.f32 %v935, 0.032258064
    %v940 = vmul.f32 %v938, 0.032258064
    %v941 = vrsqrt.pop %v939
    %v942 = vmul.f32 %v941, %v939
    %v943 = vmul.f32 %v942, %v941
    %v944 = vmul.f32 0.5, %v943
    %v945 = vsub.f32 1.5, %v944
    %v946 = vmul.f32 %v941, %v945
    %v947 = vmul.f32 %v939, %v946
    %vm948 = vcmp.eq.f32.partialorder %v939, inf
    %v949 = vsel %vm948, %v939, %v947
    %vm950 = vcmp.eq.f32.partialorder %v939, 0.0
    %v951 = vand.u32 %v939, 2147483648
    %v952 = vsel %vm950, %v951, %v949
    %v953 = vrsqrt.pop %v940
    %v954 = vmul.f32 %v953, %v940
    %v955 = vmul.f32 %v954, %v953
    %v956 = vmul.f32 0.5, %v955
    %v957 = vsub.f32 1.5, %v956
    %v958 = vmul.f32 %v953, %v957
    %v959 = vmul.f32 %v940, %v958
    %vm960 = vcmp.eq.f32.partialorder %v940, inf
    %v961 = vsel %vm960, %v940, %v959
    %vm962 = vcmp.eq.f32.partialorder %v940, 0.0
    %v963 = vand.u32 %v940, 2147483648
    %v964 = vsel %vm962, %v963, %v961
    %v965 = vadd.f32 %v952, 1e-12
    %v966 = vadd.f32 %v964, 1e-12
    %v967 = vrcp.pop %v965
    %v968 = vrcp.pop %v966
    %v969 = vld [vmem:[%s15] sm:$0x1]
    %v970 = vmul.f32 %v929, %v967
    %v971 = vmul.f32 %v930, %v968
    %v973 = vperm.slane %v969, 0
    %v975 = vmul.f32 %v973, %v970
    %v976 = vmul.f32 %v973, %v971
    %v977 = vld [vmem:[%s16] sm:$0x1]
    %v979 = vperm.slane %v977, 0
    %v981 = vadd.f32 %v975, %v979
    %v982 = vadd.f32 %v976, %v979
    %983 = vst.msk [vmem:[#allocation9] sm:$0xff] %vm128, %v981
    %984 = vst.msk [vmem:[#allocation9 + $0x8] sm:$0xff] %vm128, %v982
    // Predicated region
    $region82: #{tpu_custom_call.1} parent=1 // pred_check
      _
    $region83: #{tpu_custom_call.1} parent=1 // pred_check_branch
      %986 = sbr.rel (0) target = $region85
    $region84: #{tpu_custom_call.1} parent=1 // pred_region
      %988 = vsyncadd [#allocation5], 0
      %s989 = sshll.u32 [#allocation9], 4
      %s990 = int_to_ptr.vmem [resolvable:$true] %s989
      %s991 = sshll.u32 %s17, 4
      %s992 = int_to_ptr.hbm [resolvable:$true] %s991
      %997 = dma.vmem_to_hbm [thread:$0]  %s990, 256, %s992, [#allocation5], 128, 128, 8
    $region85: #{tpu_custom_call.1} parent=1 // pred_fallthru
      _
    // Predicated region
    $region86: #{tpu_custom_call.1} parent=1 // pred_check
      _
    $region87: #{tpu_custom_call.1} parent=1 // pred_check_branch
      %999 = sbr.rel (0) target = $region89
    $region88: #{tpu_custom_call.1} parent=1 // pred_region
      %1001 = dma.done [#allocation5], 256
    $region89: #{tpu_custom_call.1} parent=1 // pred_fallthru
      _
    %1002 = vsyncpa [#allocation4], 1
    %1003 = vsyncpa [#allocation7], 1
    %1004 = vsyncpa [#allocation5], 1

</llo_original>
